<compile_context>
chip_gen: v7x
topology: tpu7x:2x2x1
jax: 0.10.0
libtpu: 0.0.40
codegen_flags: <defaults>
</compile_context>

<pallas_src>
import functools

import jax
import jax.numpy as jnp
import numpy as np
from jax import lax
from jax.experimental import pallas as pl
from jax.experimental.pallas import tpu as pltpu

BN_EPS = 1e-5


def _im2col_gemm(x_ref, w_ref):
    """Fused 3x3 'same' conv of a batch block as a single MXU dot.

    x_ref: (Nb, H+2, W2+1, 2*Cin) bf16 -- spatially padded NHWC image with adjacent column
        pairs merged into the channel axis (xP[n,i,jj,p*Cin+c] == xpad[n,i,2*jj+p,c]).
    w_ref: (12*Cin, 2*Cout)            -- K ordered (kh, d, cin), d = column offset 0..3 inside
        the 4-wide window of an output-column pair; N ordered (parity, cout).

    Returns y: (Nb*H*W2, 2*Cout) float32; row r=(n*H+h)*W2+w2, column b*Cout+co is the
    (bias-free) conv output at pixel (h, 2*w2+b), channel co.
    """
    Nb, Hp2, W2p1, _ = x_ref.shape
    H, W2 = Hp2 - 2, W2p1 - 1
    x = x_ref[...]                                          # bf16; never upcast to f32
    # The 3x3 receptive fields of output pair (2*w2, 2*w2+1) span padded columns
    # [2*w2, 2*w2+4) = column-pairs {w2, w2+1}.  Six static slices -> one lane concat -> one dot.
    taps = []
    for kh in range(3):
        for jc in range(2):
            taps.append(x[:, kh:kh + H, jc:jc + W2, :])     # (Nb, H, W2, 2*Cin) bf16
    lhs = jnp.concatenate(taps, axis=-1)                    # (Nb, H, W2, 12*Cin) bf16
    lhs = lhs.reshape(Nb * H * W2, lhs.shape[-1])           # free leading merge (W2 % 8 == 0)
    return jnp.dot(lhs, w_ref[...], preferred_element_type=jnp.float32)


def _stats_kernel(x_ref, w_ref, sum_ref, sq_ref):
    """Phase 1: per-(parity, channel) sum(y) / sum(y*y), accumulated over the reduction grid
    axis into resident (1, 8, 2*Cout) f32 blocks (sublane rows hold replicated copies)."""
    @pl.when(pl.program_id(1) == 0)
    def _init():
        sum_ref[...] = jnp.zeros_like(sum_ref)
        sq_ref[...] = jnp.zeros_like(sq_ref)

    y = _im2col_gemm(x_ref, w_ref)                          # (R, 2*Cout) f32
    s = jnp.sum(y, axis=0, keepdims=True)                   # (1, 2*Cout)
    q = jnp.sum(y * y, axis=0, keepdims=True)
    sum_ref[...] += s[None]                                 # broadcast over the 8 dummy rows
    sq_ref[...] += q[None]


def _apply_kernel(x_ref, w_ref, scale_ref, shift_ref, o_ref):
    """Phase 2: conv -> fused BN affine -> ReLU -> 2x2 max-pool, bf16 writeback."""
    Nb, H2, W2, Cout = o_ref.shape
    y = _im2col_gemm(x_ref, w_ref)                          # (Nb*H*W2, 2*Cout) f32
    z = jnp.maximum(y * scale_ref[...] + shift_ref[...], 0.0)
    # W-pool: even/odd output columns are the two Cout-wide halves of the GEMM columns.
    zw = jnp.maximum(z[:, :Cout], z[:, Cout:])              # (Nb*H*W2, Cout)
    # H-pool: rows are (n, h, w2); splitting h into (h2, h%2) is a free leading-dim reshape.
    z4 = zw.reshape(Nb, H2, 2, W2, Cout)
    o_ref[...] = jnp.maximum(z4[:, :, 0], z4[:, :, 1]).astype(o_ref.dtype)


def _vmem_budget():
    """Scoped-VMEM limit: 48 MiB on v7x (64 MiB physical per TC), 96 MiB on v5e/v6e (128 MiB)."""
    try:
        phys = int(pltpu.get_tpu_info().vmem_capacity_bytes)
    except Exception:
        phys = 64 * 1024 * 1024          # conservative fallback (v7x-sized)
    return max(min(phys * 3 // 4, 96 * 1024 * 1024), 32 * 1024 * 1024)


def encoder_block_forward(x_nchw, wconv, bconv, gamma, beta, *,
                          compute_dtype=jnp.bfloat16, block_images=None):
    """Pallas TPU forward of EncoderBlock_(dropout=False) with training-mode BatchNorm.

    Output is bf16 NCHW (half the writeback bytes; the values already went through bf16
    inputs/weights)."""
    N, Cin, H, W = x_nchw.shape
    Cout = wconv.shape[0]
    assert H % 2 == 0 and W % 2 == 0, "MaxPool2d(2,2) needs even spatial dims"
    H2, W2 = H // 2, W // 2              # W2 % 8 == 0 keeps every in-kernel reshape layout-free

    # Conv bias intentionally unused: train-mode BN subtracts the batch mean, which absorbs any
    # per-channel constant, and the variance is unchanged -> dropping it is exact.
    del bconv

    vmem_limit = _vmem_budget()

    # ---- pick Nb (images per grid step) from a per-step VMEM estimate ----
    in_b = (H + 2) * (W2 + 1) * 2 * Cin * 2          # bf16 padded image block
    lhs_b = H * W2 * 12 * Cin * 2                    # bf16 in-VMEM im2col
    y_b = H * W2 * 2 * Cout * 4                      # f32 GEMM output
    out_b = H2 * W2 * Cout * 2                       # bf16 pooled output block
    per_img = 2 * in_b + lhs_b + 3 * y_b + 2 * out_b  # double-buffered I/O + f32 temporaries
    if block_images is None:
        nb = max(1, min(N, (vmem_limit // 3) // max(per_img, 1)))
    else:
        nb = max(1, min(N, int(block_images)))

    n_blocks = pl.cdiv(N, nb)
    n_par = 2 if n_blocks >= 2 else 1                # v7x: both TensorCores reduce the stats
    bpp = pl.cdiv(n_blocks, n_par)                   # reduction steps per parallel slot
    Np = n_par * bpp * nb                            # zero-padded batch: exact no-op for stats
                                                     # (zero image -> zero conv output, no bias)

    # ---- wrapper preamble: ONE fused pass (transpose + bf16 cast + pad + free pair-reshape) ----
    # TODO(synk): accept NHWC input upstream to drop the transpose pass entirely.
    x = jnp.transpose(x_nchw, (0, 2, 3, 1)).astype(compute_dtype)      # (N, H, W, Cin) bf16
    xp = jnp.pad(x, ((0, Np - N), (1, 1), (1, 1), (0, 0)))             # (Np, H+2, W+2, Cin)
    xP = xp.reshape(Np, H + 2, W2 + 1, 2 * Cin)                        # free row-major reshape

    # Conv weights -> (12*Cin, 2*Cout): K ordered (kh, d, cin), d in 0..3 = padded-column offset
    # inside the 4-wide window of an output-column pair; N ordered (parity b, cout).
    w_t = jnp.transpose(wconv, (2, 3, 1, 0))                           # (kh, kw, cin, cout)
    wbig = jnp.zeros((3, 4, Cin, 2, Cout), jnp.float32)
    wbig = wbig.at[:, 0:3, :, 0, :].set(w_t)                           # even columns: d = kw
    wbig = wbig.at[:, 1:4, :, 1, :].set(w_t)                           # odd columns:  d = kw + 1
    wmat = wbig.reshape(12 * Cin, 2 * Cout).astype(compute_dtype)

    def x_spec(imap):
        return pl.BlockSpec((nb, H + 2, W2 + 1, 2 * Cin), imap)

    def w_spec(imap):
        return pl.BlockSpec((12 * Cin, 2 * Cout), imap)

    # ---- phase 1: one-pass BN statistics over the conv output ----
    acc_spec = pl.BlockSpec((1, 8, 2 * Cout), lambda p, r: (p, 0, 0))
    ysum, ysq = pl.pallas_call(
        _stats_kernel,
        out_shape=(jax.ShapeDtypeStruct((n_par, 8, 2 * Cout), jnp.float32),
                   jax.ShapeDtypeStruct((n_par, 8, 2 * Cout), jnp.float32)),
        grid=(n_par, bpp),
        in_specs=[x_spec(lambda p, r: (p * bpp + r, 0, 0, 0)),
                  w_spec(lambda p, r: (0, 0))],
        out_specs=(acc_spec, acc_spec),
        compiler_params=pltpu.CompilerParams(
            dimension_semantics=("parallel", "arbitrary"),
            vmem_limit_bytes=vmem_limit),
    )(xP, wmat)

    # ---- tiny glue: fold partial sums -> per-channel scale/shift ----
    s2 = jnp.sum(ysum[:, 0, :], axis=0)              # (2*Cout,)  per (parity, channel)
    q2 = jnp.sum(ysq[:, 0, :], axis=0)
    cnt = jnp.float32(N * H * W)
    ch_sum = s2[:Cout] + s2[Cout:]
    ch_sq = q2[:Cout] + q2[Cout:]
    mean = ch_sum / cnt
    # TODO(synk): E[y^2]-mean^2 in f32 can cancel for huge N*H*W with |mean|>>std; the clamp keeps
    # it sane, a shifted two-moment accumulation would be the full fix.
    var = jnp.maximum(ch_sq / cnt - mean * mean, 0.0)    # biased variance (PyTorch train-mode BN)
    inv = lax.rsqrt(var + BN_EPS)
    scale = gamma.astype(jnp.float32) * inv
    shift = beta.astype(jnp.float32) - mean * scale
    scale2 = jnp.tile(scale, 2).reshape(1, 2 * Cout)     # same affine for both column parities
    shift2 = jnp.tile(shift, 2).reshape(1, 2 * Cout)

    # ---- phase 2: conv -> BN affine -> ReLU -> 2x2 max-pool, bf16 writeback ----
    vec_spec = pl.BlockSpec((1, 2 * Cout), lambda b: (0, 0))
    out = pl.pallas_call(
        _apply_kernel,
        out_shape=jax.ShapeDtypeStruct((Np, H2, W2, Cout), compute_dtype),
        grid=(n_par * bpp,),
        in_specs=[x_spec(lambda b: (b, 0, 0, 0)),
                  w_spec(lambda b: (0, 0)),
                  vec_spec, vec_spec],
        out_specs=pl.BlockSpec((nb, H2, W2, Cout), lambda b: (b, 0, 0, 0)),
        compiler_params=pltpu.CompilerParams(
            dimension_semantics=("parallel",),
            vmem_limit_bytes=vmem_limit),
    )(xP, wmat, scale2, shift2)

    # (Np, H2, W2, Cout) bf16 -> NCHW (padded batch rows sliced off; output stays bf16).
    return jnp.transpose(out[:N], (0, 3, 1, 2))


def reference_forward(x_nchw, wconv, bconv, gamma, beta, *, compute_dtype=jnp.float32):
    """Pure-JAX reference of PyTorch EncoderBlock_ forward (training-mode BN).
    compute_dtype mimics the kernel's bf16 input/weight rounding; the math stays float32."""
    xq = x_nchw.astype(compute_dtype).astype(jnp.float32)
    wq = wconv.astype(compute_dtype).astype(jnp.float32)
    y = lax.conv_general_dilated(
        xq, wq, window_strides=(1, 1), padding=((1, 1), (1, 1)),
        dimension_numbers=("NCHW", "OIHW", "NCHW"))
    y = y + bconv.reshape(1, -1, 1, 1).astype(jnp.float32)
    mean = jnp.mean(y, axis=(0, 2, 3), keepdims=True)
    var = jnp.mean((y - mean) ** 2, axis=(0, 2, 3), keepdims=True)
    y = (y - mean) * lax.rsqrt(var + BN_EPS)
    y = y * gamma.reshape(1, -1, 1, 1) + beta.reshape(1, -1, 1, 1)
    y = jnp.maximum(y, 0.0)
    return lax.reduce_window(y, -jnp.inf, lax.max, (1, 1, 2, 2), (1, 1, 2, 2), "VALID")


if __name__ == "__main__":
    # Small shapes consistent with the module: N=2, Cin=4, H=W=16, Cout=8.
    N, Cin, H, W, Cout = 2, 4, 16, 16, 8
    key = jax.random.PRNGKey(0)
    kx, kw, kb, kg, kbe = jax.random.split(key, 5)

    x = jax.random.normal(kx, (N, Cin, H, W), jnp.float32)
    wconv = jax.random.normal(kw, (Cout, Cin, 3, 3), jnp.float32) * 0.1
    bconv = jax.random.normal(kb, (Cout,), jnp.float32) * 0.1
    gamma = 1.0 + 0.1 * jax.random.normal(kg, (Cout,), jnp.float32)
    beta = 0.1 * jax.random.normal(kbe, (Cout,), jnp.float32)
    # TODO(synk): nn.Dropout branch (dropout=True) not implemented; module default is dropout=False.

    # Reference uses the same bf16 rounding of inputs/weights the kernel uses (math in f32); the
    # kernel additionally emits bf16 output, hence the ~1% tolerance.
    ref = jax.block_until_ready(
        reference_forward(x, wconv, bconv, gamma, beta, compute_dtype=jnp.bfloat16))

    fwd = jax.jit(encoder_block_forward)
    out = jax.block_until_ready(fwd(x, wconv, bconv, gamma, beta))
    np.testing.assert_allclose(np.asarray(out.astype(jnp.float32)), np.asarray(ref),
                               rtol=3e-2, atol=3e-2)

    # Also exercise the multi-block grid path (batch blocking + 2-way parallel stats reduction).
    fwd1 = jax.jit(functools.partial(encoder_block_forward, block_images=1))
    out1 = jax.block_until_ready(fwd1(x, wconv, bconv, gamma, beta))
    np.testing.assert_allclose(np.asarray(out1.astype(jnp.float32)), np.asarray(ref),
                               rtol=3e-2, atol=3e-2)

    print("KERNEL_OK")
</pallas_src>

<mosaic_0001>
module attributes {stable_mosaic.version = 11 : i64} {
  func.func @_stats_kernel(%arg0: i32, %arg1: i32, %arg2: memref<2x18x9x8xbf16, #tpu.memory_space<vmem>>, %arg3: memref<48x16xbf16, #tpu.memory_space<vmem>>, %arg4: memref<1x8x16xf32, #tpu.memory_space<vmem>>, %arg5: memref<1x8x16xf32, #tpu.memory_space<vmem>>) attributes {dimension_semantics = [#tpu.dimension_semantics<parallel>, #tpu.dimension_semantics<arbitrary>], iteration_bounds = array<i64: 1, 1>, scalar_prefetch = 0 : i64, scratch_operands = 0 : i64, tpu.core_type = #tpu.core_type<tc>, window_params = [{transform_indices = @transform_0, window_bounds = array<i64: 2, 18, 9, 8>}, {pipeline_mode = #tpu.pipeline_mode<synchronous>, transform_indices = @transform_1, window_bounds = array<i64: 48, 16>}, {transform_indices = @transform_2, window_bounds = array<i64: 1, 8, 16>}, {transform_indices = @transform_3, window_bounds = array<i64: 1, 8, 16>}]} {
    %c0_i32 = arith.constant 0 : i32
    %0 = arith.cmpi eq, %arg1, %c0_i32 : i32
    %1 = arith.extui %0 : i1 to i32
    %c0_i32_0 = arith.constant 0 : i32
    %2 = arith.cmpi ne, %1, %c0_i32_0 : i32
    scf.if %2 {
      %cst_20 = arith.constant 0.000000e+00 : f32
      %29 = vector.broadcast %cst_20 : f32 to vector<1x8x16xf32>
      %c0_21 = arith.constant 0 : index
      %c0_22 = arith.constant 0 : index
      %c0_23 = arith.constant 0 : index
      %30 = vector.load %arg4[%c0_21, %c0_22, %c0_23] : memref<1x8x16xf32, #tpu.memory_space<vmem>>, vector<1x8x16xf32>
      tpu.vector_store %arg4[%c0_21, %c0_22, %c0_23], %29 {strides = array<i32>} : memref<1x8x16xf32, #tpu.memory_space<vmem>>, vector<1x8x16xf32>,
      %cst_24 = arith.constant 0.000000e+00 : f32
      %31 = vector.broadcast %cst_24 : f32 to vector<1x8x16xf32>
      %c0_25 = arith.constant 0 : index
      %c0_26 = arith.constant 0 : index
      %c0_27 = arith.constant 0 : index
      %32 = vector.load %arg5[%c0_25, %c0_26, %c0_27] : memref<1x8x16xf32, #tpu.memory_space<vmem>>, vector<1x8x16xf32>
      tpu.vector_store %arg5[%c0_25, %c0_26, %c0_27], %31 {strides = array<i32>} : memref<1x8x16xf32, #tpu.memory_space<vmem>>, vector<1x8x16xf32>,
    } else {
    }
    %c0 = arith.constant 0 : index
    %c0_1 = arith.constant 0 : index
    %c0_2 = arith.constant 0 : index
    %c0_3 = arith.constant 0 : index
    %3 = vector.load %arg2[%c0, %c0_1, %c0_2, %c0_3] : memref<2x18x9x8xbf16, #tpu.memory_space<vmem>>, vector<2x18x9x8xbf16>
    %4 = vector.extract_strided_slice %3 {offsets = [0, 0, 0, 0], sizes = [2, 16, 8, 8], strides = [1, 1, 1, 1]} : vector<2x18x9x8xbf16> to vector<2x16x8x8xbf16>
    %5 = vector.extract_strided_slice %3 {offsets = [0, 0, 1, 0], sizes = [2, 16, 8, 8], strides = [1, 1, 1, 1]} : vector<2x18x9x8xbf16> to vector<2x16x8x8xbf16>
    %6 = vector.extract_strided_slice %3 {offsets = [0, 1, 0, 0], sizes = [2, 16, 8, 8], strides = [1, 1, 1, 1]} : vector<2x18x9x8xbf16> to vector<2x16x8x8xbf16>
    %7 = vector.extract_strided_slice %3 {offsets = [0, 1, 1, 0], sizes = [2, 16, 8, 8], strides = [1, 1, 1, 1]} : vector<2x18x9x8xbf16> to vector<2x16x8x8xbf16>
    %8 = vector.extract_strided_slice %3 {offsets = [0, 2, 0, 0], sizes = [2, 16, 8, 8], strides = [1, 1, 1, 1]} : vector<2x18x9x8xbf16> to vector<2x16x8x8xbf16>
    %9 = vector.extract_strided_slice %3 {offsets = [0, 2, 1, 0], sizes = [2, 16, 8, 8], strides = [1, 1, 1, 1]} : vector<2x18x9x8xbf16> to vector<2x16x8x8xbf16>
    %10 = tpu.concatenate %4, %5, %6, %7, %8, %9 in 3 : vector<2x16x8x8xbf16>, vector<2x16x8x8xbf16>, vector<2x16x8x8xbf16>, vector<2x16x8x8xbf16>, vector<2x16x8x8xbf16>, vector<2x16x8x8xbf16> -> vector<2x16x8x48xbf16>
    %11 = vector.shape_cast %10 : vector<2x16x8x48xbf16> to vector<256x48xbf16>
    %c0_4 = arith.constant 0 : index
    %c0_5 = arith.constant 0 : index
    %12 = vector.load %arg3[%c0_4, %c0_5] : memref<48x16xbf16, #tpu.memory_space<vmem>>, vector<48x16xbf16>
    %cst = arith.constant dense<0.000000e+00> : vector<256x16xf32>
    %13 = tpu.matmul %11, %12, %cst {dimension_numbers = #tpu.dot_dimension_numbers<[1], [0], [0], [1], [0, 0, 1, 1], [], []>} : vector<256x48xbf16>, vector<48x16xbf16>, vector<256x16xf32> -> vector<256x16xf32>
    %cst_6 = arith.constant dense<0.000000e+00> : vector<16xf32>
    %14 = vector.multi_reduction <add>, %13, %cst_6 [0] : vector<256x16xf32> to vector<16xf32>
    %15 = vector.shape_cast %14 : vector<16xf32> to vector<1x16xf32>
    %16 = arith.mulf %13, %13 : vector<256x16xf32>
    %cst_7 = arith.constant dense<0.000000e+00> : vector<16xf32>
    %17 = vector.multi_reduction <add>, %16, %cst_7 [0] : vector<256x16xf32> to vector<16xf32>
    %18 = vector.shape_cast %17 : vector<16xf32> to vector<1x16xf32>
    %c0_8 = arith.constant 0 : index
    %c0_9 = arith.constant 0 : index
    %c0_10 = arith.constant 0 : index
    %19 = vector.load %arg4[%c0_8, %c0_9, %c0_10] : memref<1x8x16xf32, #tpu.memory_space<vmem>>, vector<1x8x16xf32>
    %20 = vector.shape_cast %15 : vector<1x16xf32> to vector<1x1x16xf32>
    %21 = vector.broadcast %20 : vector<1x1x16xf32> to vector<1x8x16xf32>
    %22 = arith.addf %19, %21 : vector<1x8x16xf32>
    %c0_11 = arith.constant 0 : index
    %c0_12 = arith.constant 0 : index
    %c0_13 = arith.constant 0 : index
    %23 = vector.load %arg4[%c0_11, %c0_12, %c0_13] : memref<1x8x16xf32, #tpu.memory_space<vmem>>, vector<1x8x16xf32>
    tpu.vector_store %arg4[%c0_11, %c0_12, %c0_13], %22 {strides = array<i32>} : memref<1x8x16xf32, #tpu.memory_space<vmem>>, vector<1x8x16xf32>,
    %c0_14 = arith.constant 0 : index
    %c0_15 = arith.constant 0 : index
    %c0_16 = arith.constant 0 : index
    %24 = vector.load %arg5[%c0_14, %c0_15, %c0_16] : memref<1x8x16xf32, #tpu.memory_space<vmem>>, vector<1x8x16xf32>
    %25 = vector.shape_cast %18 : vector<1x16xf32> to vector<1x1x16xf32>
    %26 = vector.broadcast %25 : vector<1x1x16xf32> to vector<1x8x16xf32>
    %27 = arith.addf %24, %26 : vector<1x8x16xf32>
    %c0_17 = arith.constant 0 : index
    %c0_18 = arith.constant 0 : index
    %c0_19 = arith.constant 0 : index
    %28 = vector.load %arg5[%c0_17, %c0_18, %c0_19] : memref<1x8x16xf32, #tpu.memory_space<vmem>>, vector<1x8x16xf32>
    tpu.vector_store %arg5[%c0_17, %c0_18, %c0_19], %27 {strides = array<i32>} : memref<1x8x16xf32, #tpu.memory_space<vmem>>, vector<1x8x16xf32>,
    return
  }
  func.func @transform_0(%arg0: i32, %arg1: i32) -> (i32, i32, i32, i32) {
    %c1_i32 = arith.constant 1 : i32
    %0 = arith.muli %arg0, %c1_i32 : i32
    %1 = arith.addi %0, %arg1 : i32
    %c0_i32 = arith.constant 0 : i32
    %c0_i32_0 = arith.constant 0 : i32
    %c0_i32_1 = arith.constant 0 : i32
    %c0_i32_2 = arith.constant 0 : i32
    return %1, %c0_i32, %c0_i32_0, %c0_i32_1 : i32, i32, i32, i32
  }
  func.func @transform_1(%arg0: i32, %arg1: i32) -> (i32, i32) {
    %c0_i32 = arith.constant 0 : i32
    %c0_i32_0 = arith.constant 0 : i32
    %c0_i32_1 = arith.constant 0 : i32
    return %c0_i32, %c0_i32_0 : i32, i32
  }
  func.func @transform_2(%arg0: i32, %arg1: i32) -> (i32, i32, i32) {
    %c0_i32 = arith.constant 0 : i32
    %c0_i32_0 = arith.constant 0 : i32
    %c0_i32_1 = arith.constant 0 : i32
    return %arg0, %c0_i32, %c0_i32_0 : i32, i32, i32
  }
  func.func @transform_3(%arg0: i32, %arg1: i32) -> (i32, i32, i32) {
    %c0_i32 = arith.constant 0 : i32
    %c0_i32_0 = arith.constant 0 : i32
    %c0_i32_1 = arith.constant 0 : i32
    return %arg0, %c0_i32, %c0_i32_0 : i32, i32, i32
  }
}

module attributes {stable_mosaic.version = 11 : i64} {
  func.func @_apply_kernel(%arg0: i32, %arg1: memref<2x18x9x8xbf16, #tpu.memory_space<vmem>>, %arg2: memref<48x16xbf16, #tpu.memory_space<vmem>>, %arg3: memref<1x16xf32, #tpu.memory_space<vmem>>, %arg4: memref<1x16xf32, #tpu.memory_space<vmem>>, %arg5: memref<2x8x8x8xbf16, #tpu.memory_space<vmem>>) attributes {dimension_semantics = [#tpu.dimension_semantics<parallel>], iteration_bounds = array<i64: 1>, scalar_prefetch = 0 : i64, scratch_operands = 0 : i64, tpu.core_type = #tpu.core_type<tc>, window_params = [{transform_indices = @transform_0, window_bounds = array<i64: 2, 18, 9, 8>}, {pipeline_mode = #tpu.pipeline_mode<synchronous>, transform_indices = @transform_1, window_bounds = array<i64: 48, 16>}, {pipeline_mode = #tpu.pipeline_mode<synchronous>, transform_indices = @transform_2, window_bounds = array<i64: 1, 16>}, {pipeline_mode = #tpu.pipeline_mode<synchronous>, transform_indices = @transform_3, window_bounds = array<i64: 1, 16>}, {transform_indices = @transform_4, window_bounds = array<i64: 2, 8, 8, 8>}]} {
    %c0 = arith.constant 0 : index
    %c0_0 = arith.constant 0 : index
    %c0_1 = arith.constant 0 : index
    %c0_2 = arith.constant 0 : index
    %0 = vector.load %arg1[%c0, %c0_0, %c0_1, %c0_2] : memref<2x18x9x8xbf16, #tpu.memory_space<vmem>>, vector<2x18x9x8xbf16>
    %1 = vector.extract_strided_slice %0 {offsets = [0, 0, 0, 0], sizes = [2, 16, 8, 8], strides = [1, 1, 1, 1]} : vector<2x18x9x8xbf16> to vector<2x16x8x8xbf16>
    %2 = vector.extract_strided_slice %0 {offsets = [0, 0, 1, 0], sizes = [2, 16, 8, 8], strides = [1, 1, 1, 1]} : vector<2x18x9x8xbf16> to vector<2x16x8x8xbf16>
    %3 = vector.extract_strided_slice %0 {offsets = [0, 1, 0, 0], sizes = [2, 16, 8, 8], strides = [1, 1, 1, 1]} : vector<2x18x9x8xbf16> to vector<2x16x8x8xbf16>
    %4 = vector.extract_strided_slice %0 {offsets = [0, 1, 1, 0], sizes = [2, 16, 8, 8], strides = [1, 1, 1, 1]} : vector<2x18x9x8xbf16> to vector<2x16x8x8xbf16>
    %5 = vector.extract_strided_slice %0 {offsets = [0, 2, 0, 0], sizes = [2, 16, 8, 8], strides = [1, 1, 1, 1]} : vector<2x18x9x8xbf16> to vector<2x16x8x8xbf16>
    %6 = vector.extract_strided_slice %0 {offsets = [0, 2, 1, 0], sizes = [2, 16, 8, 8], strides = [1, 1, 1, 1]} : vector<2x18x9x8xbf16> to vector<2x16x8x8xbf16>
    %7 = tpu.concatenate %1, %2, %3, %4, %5, %6 in 3 : vector<2x16x8x8xbf16>, vector<2x16x8x8xbf16>, vector<2x16x8x8xbf16>, vector<2x16x8x8xbf16>, vector<2x16x8x8xbf16>, vector<2x16x8x8xbf16> -> vector<2x16x8x48xbf16>
    %8 = vector.shape_cast %7 : vector<2x16x8x48xbf16> to vector<256x48xbf16>
    %c0_3 = arith.constant 0 : index
    %c0_4 = arith.constant 0 : index
    %9 = vector.load %arg2[%c0_3, %c0_4] : memref<48x16xbf16, #tpu.memory_space<vmem>>, vector<48x16xbf16>
    %cst = arith.constant dense<0.000000e+00> : vector<256x16xf32>
    %10 = tpu.matmul %8, %9, %cst {dimension_numbers = #tpu.dot_dimension_numbers<[1], [0], [0], [1], [0, 0, 1, 1], [], []>} : vector<256x48xbf16>, vector<48x16xbf16>, vector<256x16xf32> -> vector<256x16xf32>
    %c0_5 = arith.constant 0 : index
    %c0_6 = arith.constant 0 : index
    %11 = vector.load %arg3[%c0_5, %c0_6] : memref<1x16xf32, #tpu.memory_space<vmem>>, vector<1x16xf32>
    %12 = vector.broadcast %11 : vector<1x16xf32> to vector<256x16xf32>
    %13 = arith.mulf %10, %12 : vector<256x16xf32>
    %c0_7 = arith.constant 0 : index
    %c0_8 = arith.constant 0 : index
    %14 = vector.load %arg4[%c0_7, %c0_8] : memref<1x16xf32, #tpu.memory_space<vmem>>, vector<1x16xf32>
    %15 = vector.broadcast %14 : vector<1x16xf32> to vector<256x16xf32>
    %16 = arith.addf %13, %15 : vector<256x16xf32>
    %cst_9 = arith.constant 0.000000e+00 : f32
    %17 = vector.broadcast %cst_9 : f32 to vector<256x16xf32>
    %18 = arith.maximumf %16, %17 : vector<256x16xf32>
    %19 = vector.extract_strided_slice %18 {offsets = [0, 0], sizes = [256, 8], strides = [1, 1]} : vector<256x16xf32> to vector<256x8xf32>
    %20 = vector.extract_strided_slice %18 {offsets = [0, 8], sizes = [256, 8], strides = [1, 1]} : vector<256x16xf32> to vector<256x8xf32>
    %21 = arith.maximumf %19, %20 : vector<256x8xf32>
    %22 = vector.shape_cast %21 : vector<256x8xf32> to vector<2x8x2x8x8xf32>
    %23 = vector.extract_strided_slice %22 {offsets = [0, 0, 0, 0, 0], sizes = [2, 8, 1, 8, 8], strides = [1, 1, 1, 1, 1]} : vector<2x8x2x8x8xf32> to vector<2x8x1x8x8xf32>
    %24 = vector.shape_cast %23 : vector<2x8x1x8x8xf32> to vector<2x8x8x8xf32>
    %25 = vector.extract_strided_slice %22 {offsets = [0, 0, 1, 0, 0], sizes = [2, 8, 1, 8, 8], strides = [1, 1, 1, 1, 1]} : vector<2x8x2x8x8xf32> to vector<2x8x1x8x8xf32>
    %26 = vector.shape_cast %25 : vector<2x8x1x8x8xf32> to vector<2x8x8x8xf32>
    %27 = arith.maximumf %24, %26 : vector<2x8x8x8xf32>
    %28 = arith.truncf %27 : vector<2x8x8x8xf32> to vector<2x8x8x8xbf16>
    %c0_10 = arith.constant 0 : index
    %c0_11 = arith.constant 0 : index
    %c0_12 = arith.constant 0 : index
    %c0_13 = arith.constant 0 : index
    %29 = vector.load %arg5[%c0_10, %c0_11, %c0_12, %c0_13] : memref<2x8x8x8xbf16, #tpu.memory_space<vmem>>, vector<2x8x8x8xbf16>
    tpu.vector_store %arg5[%c0_10, %c0_11, %c0_12, %c0_13], %28 {strides = array<i32>} : memref<2x8x8x8xbf16, #tpu.memory_space<vmem>>, vector<2x8x8x8xbf16>,
    return
  }
  func.func @transform_0(%arg0: i32) -> (i32, i32, i32, i32) {
    %c0_i32 = arith.constant 0 : i32
    %c0_i32_0 = arith.constant 0 : i32
    %c0_i32_1 = arith.constant 0 : i32
    %c0_i32_2 = arith.constant 0 : i32
    return %arg0, %c0_i32, %c0_i32_0, %c0_i32_1 : i32, i32, i32, i32
  }
  func.func @transform_1(%arg0: i32) -> (i32, i32) {
    %c0_i32 = arith.constant 0 : i32
    %c0_i32_0 = arith.constant 0 : i32
    %c0_i32_1 = arith.constant 0 : i32
    return %c0_i32, %c0_i32_0 : i32, i32
  }
  func.func @transform_2(%arg0: i32) -> (i32, i32) {
    %c0_i32 = arith.constant 0 : i32
    %c0_i32_0 = arith.constant 0 : i32
    %c0_i32_1 = arith.constant 0 : i32
    return %c0_i32, %c0_i32_0 : i32, i32
  }
  func.func @transform_3(%arg0: i32) -> (i32, i32) {
    %c0_i32 = arith.constant 0 : i32
    %c0_i32_0 = arith.constant 0 : i32
    %c0_i32_1 = arith.constant 0 : i32
    return %c0_i32, %c0_i32_0 : i32, i32
  }
  func.func @transform_4(%arg0: i32) -> (i32, i32, i32, i32) {
    %c0_i32 = arith.constant 0 : i32
    %c0_i32_0 = arith.constant 0 : i32
    %c0_i32_1 = arith.constant 0 : i32
    %c0_i32_2 = arith.constant 0 : i32
    return %arg0, %c0_i32, %c0_i32_0, %c0_i32_1 : i32, i32, i32, i32
  }
}

</mosaic_0001>

<llo_original>
// kernel: tile.18
$region0: #{tile.18}
  #allocation0 [shape = 's32[1]{0}', space=sflag, size = 0x4, scoped, tag = 'scoped memory for tile.18']
  %s0 = inlined_call_operand.vmem [shape: f32[8], index: 0, kind: input, shape index: {}]
  %s1 = inlined_call_operand.vmem [shape: f32[2,8], index: 1, kind: output, shape index: {}]
  // Predicated region
  $region2: #{tile.18} parent=0 // pred_check
    _
  $region3: #{tile.18} parent=0 // pred_check_branch
    %3 = sbr.rel (0) target = $region5
  $region4: #{tile.18} parent=0 // pred_region
    _
  $region5: #{tile.18} parent=0 // pred_fallthru
    _
  %v4 = vld [vmem:[%s0] ss:$0 sm:$0xff]
  %5 = vst [vmem:[%s1] sm:$0x3] %v4

// kernel: tile.19
$region0: #{tile.19}
  %s0 = inlined_call_operand.vmem [shape: f32[2,8], index: 0, kind: input, shape index: {}]
  %s1 = inlined_call_operand.vmem [shape: f32[1,16], index: 1, kind: output, shape index: {}]
  $region1: #{tile.19} parent=0
    #allocation0 [shape = 'u8[4096]{0}', space=vmem, size = 0x1000, scoped, tag = 'scoped mem for output reshape']
    #allocation1 [shape = 'u8[4096]{0}', space=vmem, size = 0x1000, scoped, tag = 'scoped mem for input reshape']
    %s3 = sshllo.u32 0, 2
    %v4 = vld [vmem:[%s0] sm:%s3]
    %5 = vst [vmem:[#allocation1] sm:%s3] %v4
    %v6 = vld [vmem:[#allocation1] sm:$0x1]
    %vm7 = vcmask 64512
    %8 = vst.msk [vmem:[#allocation0] sm:$0x1] %vm7, %v6
    %s9 = scalar_lea.vmem [#allocation1], 1
    %v10 = vld [vmem:[%s9] sm:$0x1]
    %11 = vrot.lane.b32.xlu0 %v10, 8
    %v12 = vpop.permute.xlu0 %11
    %vm13 = vcmask 130112
    %14 = vst.msk [vmem:[#allocation0] sm:$0x1] %vm13, %v12
    %s16 = sshllo.u32 0, 1
    %v18 = vld [vmem:[#allocation0] sm:%s16]
    %s19 = sshllo.u32 0, 1
    %20 = vst [vmem:[%s1] sm:%s19] %v18

// kernel: encoder_block_forward.2
$region0: #{encoder_block_forward.2}
  #allocation0 [shape = 'u32[]', space=smem, size = 0x4, offset = 0x4, fixed_abs, tag = 'smem constant byte address 0x4 - core index']
  #allocation1 [shape = 'u32[144,128]{1,0:T(1,128)}', space=vmem, size = 0x12000, scoped, tag = 'internal scratch']
  %s0 = inlined_call_operand.vmem [shape: bf16[2,18,9,8], index: 0, kind: input, shape index: {}]
  %s1 = inlined_call_operand.vmem [shape: bf16[48,16], index: 1, kind: input, shape index: {}]
  %s2 = inlined_call_operand.vmem [shape: f32[1,8,16], index: 2, kind: output, shape index: {0}]
  %s3 = inlined_call_operand.vmem [shape: f32[1,8,16], index: 3, kind: output, shape index: {1}]
  %4 = xla_tuple %s2, %s3
  %s5 = sld [smem:[#allocation0]]
  $region30: #{encoder_block_forward.2} parent=0
    _
  %s7 = ssub.s32 1, %s5
  %s8 = scalar_select 0, %s7, %s5
  // Predicated region
  $region2: #{encoder_block_forward.2} parent=0 // pred_check
    _
  $region3: #{encoder_block_forward.2} parent=0 // pred_check_branch
    %10 = sbr.rel (0) target = $region5
  $region4: #{encoder_block_forward.2} parent=0 // pred_region
    %s11 = sadd.s32 0, 0
    %s12 = smul.u32 2, %s11
    %p13 = scmp.lt.s32.totalorder %s12, 1
    %s14 = scalar_select %p13, %s12, 1
    %s15 = smul.addr %s14, 36
    %s16 = smul.addr %s15, 4
    %s17 = scalar_lea.vmem %s0, %s16
    %s18 = sadd.s32 0, 0
    %s19 = smul.u32 2, %s18
  $region5: #{encoder_block_forward.2} parent=0 // pred_fallthru
    _
  // Predicated region
  $region6: #{encoder_block_forward.2} parent=0 // pred_check
    _
  $region7: #{encoder_block_forward.2} parent=0 // pred_check_branch
    %21 = sbr.rel (0) target = $region9
  $region8: #{encoder_block_forward.2} parent=0 // pred_region
    _
  $region9: #{encoder_block_forward.2} parent=0 // pred_fallthru
    _
  %s22 = sadd.s32 0, 0
  %s23 = smul.u32 2, %s22
  %p24 = scmp.lt.s32.totalorder %s23, 1
  %s25 = scalar_select %p24, %s23, 1
  %s26 = smul.addr %s25, 36
  %s27 = smul.addr %s26, 4
  %s28 = scalar_lea.vmem %s0, %s27
  %s29 = sadd.s32 0, 0
  %s30 = smul.u32 2, %s29
  %p31 = scmp.lt.s32.totalorder %s30, 1
  %s32 = scalar_select %p31, %s30, 1
  %s33 = smul.addr %s32, 36
  %s34 = smul.addr %s33, 4
  %s35 = scalar_lea.vmem %s0, %s34
  %s36 = sadd.s32 0, 0
  %s37 = smul.u32 2, %s36
  %p39 = scmp.eq.s32.totalorder 0, 0
  // Predicated region
  $region10: #{encoder_block_forward.2} parent=0 // pred_check
    %p40 = pneg %p39
  $region11: #{encoder_block_forward.2} parent=0 // pred_check_branch
    %42 = sbr.rel (%p40) target = $region13
  $region12: #{encoder_block_forward.2} parent=0 // pred_region
    %vm43 = vcmask 130048
    %44 = vst.msk [vmem:[%s2] sm:$0xff] %vm43, 0.0
    %45 = vst.msk [vmem:[%s3] sm:$0xff] %vm43, 0.0
  $region13: #{encoder_block_forward.2} parent=0 // pred_fallthru
    _
  %v46 = vld [vmem:[%s35] sm:$0xf]
  %v47 = vld [vmem:[%s35 + $0x4] sm:$0x1]
  %v48 = vld [vmem:[%s35 + $0x8] sm:$0xf]
  %v49 = vld [vmem:[%s35 + $0xc] sm:$0x1]
  %v50 = vld [vmem:[%s35 + $0x10] sm:$0xf]
  %v51 = vld [vmem:[%s35 + $0x14] sm:$0x1]
  %v52 = vld [vmem:[%s35 + $0x18] sm:$0xf]
  %v53 = vld [vmem:[%s35 + $0x1c] sm:$0x1]
  %v54 = vld [vmem:[%s35 + $0x20] sm:$0xf]
  %v55 = vld [vmem:[%s35 + $0x24] sm:$0x1]
  %v56 = vld [vmem:[%s35 + $0x28] sm:$0xf]
  %v57 = vld [vmem:[%s35 + $0x2c] sm:$0x1]
  %v58 = vld [vmem:[%s35 + $0x30] sm:$0xf]
  %v59 = vld [vmem:[%s35 + $0x34] sm:$0x1]
  %v60 = vld [vmem:[%s35 + $0x38] sm:$0xf]
  %v61 = vld [vmem:[%s35 + $0x3c] sm:$0x1]
  %v62 = vld [vmem:[%s35 + $0x40] sm:$0xf]
  %v63 = vld [vmem:[%s35 + $0x44] sm:$0x1]
  %v64 = vld [vmem:[%s35 + $0x48] sm:$0xf]
  %v65 = vld [vmem:[%s35 + $0x4c] sm:$0x1]
  %v66 = vld [vmem:[%s35 + $0x50] sm:$0xf]
  %v67 = vld [vmem:[%s35 + $0x54] sm:$0x1]
  %v68 = vld [vmem:[%s35 + $0x58] sm:$0xf]
  %v69 = vld [vmem:[%s35 + $0x5c] sm:$0x1]
  %v70 = vld [vmem:[%s35 + $0x60] sm:$0xf]
  %v71 = vld [vmem:[%s35 + $0x64] sm:$0x1]
  %v72 = vld [vmem:[%s35 + $0x68] sm:$0xf]
  %v73 = vld [vmem:[%s35 + $0x6c] sm:$0x1]
  %v74 = vld [vmem:[%s35 + $0x70] sm:$0xf]
  %v75 = vld [vmem:[%s35 + $0x74] sm:$0x1]
  %v76 = vld [vmem:[%s35 + $0x78] sm:$0xf]
  %v77 = vld [vmem:[%s35 + $0x7c] sm:$0x1]
  %v78 = vld [vmem:[%s35 + $0x80] sm:$0xf]
  %v79 = vld [vmem:[%s35 + $0x84] sm:$0x1]
  %v80 = vld [vmem:[%s35 + $0x88] sm:$0xf]
  %v81 = vld [vmem:[%s35 + $0x8c] sm:$0x1]
  %v82 = vld [vmem:[%s35 + $0x90] sm:$0xf]
  %v83 = vld [vmem:[%s35 + $0x94] sm:$0x1]
  %v84 = vld [vmem:[%s35 + $0x98] sm:$0xf]
  %v85 = vld [vmem:[%s35 + $0x9c] sm:$0x1]
  %v86 = vld [vmem:[%s35 + $0xa0] sm:$0xf]
  %v87 = vld [vmem:[%s35 + $0xa4] sm:$0x1]
  %v88 = vld [vmem:[%s35 + $0xa8] sm:$0xf]
  %v89 = vld [vmem:[%s35 + $0xac] sm:$0x1]
  %v90 = vld [vmem:[%s35 + $0xb0] sm:$0xf]
  %v91 = vld [vmem:[%s35 + $0xb4] sm:$0x1]
  %v92 = vld [vmem:[%s35 + $0xb8] sm:$0xf]
  %v93 = vld [vmem:[%s35 + $0xbc] sm:$0x1]
  %v94 = vld [vmem:[%s35 + $0xc0] sm:$0xf]
  %v95 = vld [vmem:[%s35 + $0xc4] sm:$0x1]
  %v96 = vld [vmem:[%s35 + $0xc8] sm:$0xf]
  %v97 = vld [vmem:[%s35 + $0xcc] sm:$0x1]
  %v98 = vld [vmem:[%s35 + $0xd0] sm:$0xf]
  %v99 = vld [vmem:[%s35 + $0xd4] sm:$0x1]
  %v100 = vld [vmem:[%s35 + $0xd8] sm:$0xf]
  %v101 = vld [vmem:[%s35 + $0xdc] sm:$0x1]
  %v102 = vld [vmem:[%s35 + $0xe0] sm:$0xf]
  %v103 = vld [vmem:[%s35 + $0xe4] sm:$0x1]
  %v104 = vld [vmem:[%s35 + $0xe8] sm:$0xf]
  %v105 = vld [vmem:[%s35 + $0xec] sm:$0x1]
  %v106 = vld [vmem:[%s35 + $0xf0] sm:$0xf]
  %v107 = vld [vmem:[%s35 + $0xf4] sm:$0x1]
  %v108 = vld [vmem:[%s35 + $0xf8] sm:$0xf]
  %v109 = vld [vmem:[%s35 + $0xfc] sm:$0x1]
  %v110 = vld [vmem:[%s35 + $0x100] sm:$0xf]
  %v111 = vld [vmem:[%s35 + $0x104] sm:$0x1]
  %v112 = vld [vmem:[%s35 + $0x108] sm:$0xf]
  %v113 = vld [vmem:[%s35 + $0x10c] sm:$0x1]
  %v114 = vld [vmem:[%s35 + $0x110] sm:$0xf]
  %v115 = vld [vmem:[%s35 + $0x114] sm:$0x1]
  %v116 = vld [vmem:[%s35 + $0x118] sm:$0xf]
  %v117 = vld [vmem:[%s35 + $0x11c] sm:$0x1]
  %v182 = vunpack.c.l.b16 %v46
  %v183 = vunpack.c.l.b16 %v47
  %v184 = vunpack.c.l.b16 %v48
  %v185 = vunpack.c.l.b16 %v49
  %v186 = vunpack.c.l.b16 %v50
  %v187 = vunpack.c.l.b16 %v51
  %v188 = vunpack.c.l.b16 %v52
  %v189 = vunpack.c.l.b16 %v53
  %v190 = vunpack.c.l.b16 %v54
  %v191 = vunpack.c.l.b16 %v55
  %v192 = vunpack.c.l.b16 %v56
  %v193 = vunpack.c.l.b16 %v57
  %v194 = vunpack.c.l.b16 %v58
  %v195 = vunpack.c.l.b16 %v59
  %v196 = vunpack.c.l.b16 %v60
  %v197 = vunpack.c.l.b16 %v61
  %v198 = vunpack.c.l.b16 %v62
  %v199 = vunpack.c.l.b16 %v63
  %v200 = vunpack.c.l.b16 %v64
  %v201 = vunpack.c.l.b16 %v65
  %v202 = vunpack.c.l.b16 %v66
  %v203 = vunpack.c.l.b16 %v67
  %v204 = vunpack.c.l.b16 %v68
  %v205 = vunpack.c.l.b16 %v69
  %v206 = vunpack.c.l.b16 %v70
  %v207 = vunpack.c.l.b16 %v71
  %v208 = vunpack.c.l.b16 %v72
  %v209 = vunpack.c.l.b16 %v73
  %v210 = vunpack.c.l.b16 %v74
  %v211 = vunpack.c.l.b16 %v75
  %v212 = vunpack.c.l.b16 %v76
  %v213 = vunpack.c.l.b16 %v77
  %v214 = vunpack.c.l.b16 %v82
  %v215 = vunpack.c.l.b16 %v83
  %v216 = vunpack.c.l.b16 %v84
  %v217 = vunpack.c.l.b16 %v85
  %v218 = vunpack.c.l.b16 %v86
  %v219 = vunpack.c.l.b16 %v87
  %v220 = vunpack.c.l.b16 %v88
  %v221 = vunpack.c.l.b16 %v89
  %v222 = vunpack.c.l.b16 %v90
  %v223 = vunpack.c.l.b16 %v91
  %v224 = vunpack.c.l.b16 %v92
  %v225 = vunpack.c.l.b16 %v93
  %v226 = vunpack.c.l.b16 %v94
  %v227 = vunpack.c.l.b16 %v95
  %v228 = vunpack.c.l.b16 %v96
  %v229 = vunpack.c.l.b16 %v97
  %v230 = vunpack.c.l.b16 %v98
  %v231 = vunpack.c.l.b16 %v99
  %v232 = vunpack.c.l.b16 %v100
  %v233 = vunpack.c.l.b16 %v101
  %v234 = vunpack.c.l.b16 %v102
  %v235 = vunpack.c.l.b16 %v103
  %v236 = vunpack.c.l.b16 %v104
  %v237 = vunpack.c.l.b16 %v105
  %v238 = vunpack.c.l.b16 %v106
  %v239 = vunpack.c.l.b16 %v107
  %v240 = vunpack.c.l.b16 %v108
  %v241 = vunpack.c.l.b16 %v109
  %v242 = vunpack.c.l.b16 %v110
  %v243 = vunpack.c.l.b16 %v111
  %v244 = vunpack.c.l.b16 %v112
  %v245 = vunpack.c.l.b16 %v113
  %v246 = vpack.c.b16 %v183, %v182
  %v247 = vpack.c.b16 %v185, %v184
  %v248 = vpack.c.b16 %v187, %v186
  %v249 = vpack.c.b16 %v189, %v188
  %v250 = vpack.c.b16 %v191, %v190
  %v251 = vpack.c.b16 %v193, %v192
  %v252 = vpack.c.b16 %v195, %v194
  %v253 = vpack.c.b16 %v197, %v196
  %v254 = vpack.c.b16 %v199, %v198
  %v255 = vpack.c.b16 %v201, %v200
  %v256 = vpack.c.b16 %v203, %v202
  %v257 = vpack.c.b16 %v205, %v204
  %v258 = vpack.c.b16 %v207, %v206
  %v259 = vpack.c.b16 %v209, %v208
  %v260 = vpack.c.b16 %v211, %v210
  %v261 = vpack.c.b16 %v213, %v212
  %v262 = vpack.c.b16 %v215, %v214
  %v263 = vpack.c.b16 %v217, %v216
  %v264 = vpack.c.b16 %v219, %v218
  %v265 = vpack.c.b16 %v221, %v220
  %v266 = vpack.c.b16 %v223, %v222
  %v267 = vpack.c.b16 %v225, %v224
  %v268 = vpack.c.b16 %v227, %v226
  %v269 = vpack.c.b16 %v229, %v228
  %v270 = vpack.c.b16 %v231, %v230
  %v271 = vpack.c.b16 %v233, %v232
  %v272 = vpack.c.b16 %v235, %v234
  %v273 = vpack.c.b16 %v237, %v236
  %v274 = vpack.c.b16 %v239, %v238
  %v275 = vpack.c.b16 %v241, %v240
  %v276 = vpack.c.b16 %v243, %v242
  %v277 = vpack.c.b16 %v245, %v244
  %v279 = vshrl.u32 %v246, 16
  %v281 = vshll.u32 %v246, 16
  %v283 = vrot.slane %v281, 1
  %v284 = vor.u32 %v279, %v283
  %v286 = vshrl.u32 %v247, 16
  %v288 = vshll.u32 %v247, 16
  %v290 = vrot.slane %v288, 1
  %v291 = vor.u32 %v286, %v290
  %v293 = vshrl.u32 %v248, 16
  %v295 = vshll.u32 %v248, 16
  %v297 = vrot.slane %v295, 1
  %v298 = vor.u32 %v293, %v297
  %v300 = vshrl.u32 %v249, 16
  %v302 = vshll.u32 %v249, 16
  %v304 = vrot.slane %v302, 1
  %v305 = vor.u32 %v300, %v304
  %v307 = vshrl.u32 %v250, 16
  %v309 = vshll.u32 %v250, 16
  %v311 = vrot.slane %v309, 1
  %v312 = vor.u32 %v307, %v311
  %v314 = vshrl.u32 %v251, 16
  %v316 = vshll.u32 %v251, 16
  %v318 = vrot.slane %v316, 1
  %v319 = vor.u32 %v314, %v318
  %v321 = vshrl.u32 %v252, 16
  %v323 = vshll.u32 %v252, 16
  %v325 = vrot.slane %v323, 1
  %v326 = vor.u32 %v321, %v325
  %v328 = vshrl.u32 %v253, 16
  %v330 = vshll.u32 %v253, 16
  %v332 = vrot.slane %v330, 1
  %v333 = vor.u32 %v328, %v332
  %v335 = vshrl.u32 %v254, 16
  %v337 = vshll.u32 %v254, 16
  %v339 = vrot.slane %v337, 1
  %v340 = vor.u32 %v335, %v339
  %v342 = vshrl.u32 %v255, 16
  %v344 = vshll.u32 %v255, 16
  %v346 = vrot.slane %v344, 1
  %v347 = vor.u32 %v342, %v346
  %v349 = vshrl.u32 %v256, 16
  %v351 = vshll.u32 %v256, 16
  %v353 = vrot.slane %v351, 1
  %v354 = vor.u32 %v349, %v353
  %v356 = vshrl.u32 %v257, 16
  %v358 = vshll.u32 %v257, 16
  %v360 = vrot.slane %v358, 1
  %v361 = vor.u32 %v356, %v360
  %v363 = vshrl.u32 %v258, 16
  %v365 = vshll.u32 %v258, 16
  %v367 = vrot.slane %v365, 1
  %v368 = vor.u32 %v363, %v367
  %v370 = vshrl.u32 %v259, 16
  %v372 = vshll.u32 %v259, 16
  %v374 = vrot.slane %v372, 1
  %v375 = vor.u32 %v370, %v374
  %v377 = vshrl.u32 %v260, 16
  %v379 = vshll.u32 %v260, 16
  %v381 = vrot.slane %v379, 1
  %v382 = vor.u32 %v377, %v381
  %v384 = vshrl.u32 %v261, 16
  %v386 = vshll.u32 %v261, 16
  %v388 = vrot.slane %v386, 1
  %v389 = vor.u32 %v384, %v388
  %v391 = vshrl.u32 %v262, 16
  %v393 = vshll.u32 %v262, 16
  %v395 = vrot.slane %v393, 1
  %v396 = vor.u32 %v391, %v395
  %v398 = vshrl.u32 %v263, 16
  %v400 = vshll.u32 %v263, 16
  %v402 = vrot.slane %v400, 1
  %v403 = vor.u32 %v398, %v402
  %v405 = vshrl.u32 %v264, 16
  %v407 = vshll.u32 %v264, 16
  %v409 = vrot.slane %v407, 1
  %v410 = vor.u32 %v405, %v409
  %v412 = vshrl.u32 %v265, 16
  %v414 = vshll.u32 %v265, 16
  %v416 = vrot.slane %v414, 1
  %v417 = vor.u32 %v412, %v416
  %v419 = vshrl.u32 %v266, 16
  %v421 = vshll.u32 %v266, 16
  %v423 = vrot.slane %v421, 1
  %v424 = vor.u32 %v419, %v423
  %v426 = vshrl.u32 %v267, 16
  %v428 = vshll.u32 %v267, 16
  %v430 = vrot.slane %v428, 1
  %v431 = vor.u32 %v426, %v430
  %v433 = vshrl.u32 %v268, 16
  %v435 = vshll.u32 %v268, 16
  %v437 = vrot.slane %v435, 1
  %v438 = vor.u32 %v433, %v437
  %v440 = vshrl.u32 %v269, 16
  %v442 = vshll.u32 %v269, 16
  %v444 = vrot.slane %v442, 1
  %v445 = vor.u32 %v440, %v444
  %v447 = vshrl.u32 %v270, 16
  %v449 = vshll.u32 %v270, 16
  %v451 = vrot.slane %v449, 1
  %v452 = vor.u32 %v447, %v451
  %v454 = vshrl.u32 %v271, 16
  %v456 = vshll.u32 %v271, 16
  %v458 = vrot.slane %v456, 1
  %v459 = vor.u32 %v454, %v458
  %v461 = vshrl.u32 %v272, 16
  %v463 = vshll.u32 %v272, 16
  %v465 = vrot.slane %v463, 1
  %v466 = vor.u32 %v461, %v465
  %v468 = vshrl.u32 %v273, 16
  %v470 = vshll.u32 %v273, 16
  %v472 = vrot.slane %v470, 1
  %v473 = vor.u32 %v468, %v472
  %v475 = vshrl.u32 %v274, 16
  %v477 = vshll.u32 %v274, 16
  %v479 = vrot.slane %v477, 1
  %v480 = vor.u32 %v475, %v479
  %v482 = vshrl.u32 %v275, 16
  %v484 = vshll.u32 %v275, 16
  %v486 = vrot.slane %v484, 1
  %v487 = vor.u32 %v482, %v486
  %v489 = vshrl.u32 %v276, 16
  %v491 = vshll.u32 %v276, 16
  %v493 = vrot.slane %v491, 1
  %v494 = vor.u32 %v489, %v493
  %v496 = vshrl.u32 %v277, 16
  %v498 = vshll.u32 %v277, 16
  %v500 = vrot.slane %v498, 1
  %v501 = vor.u32 %v496, %v500
  %502 = vrot.lane.b32.xlu0 %v284, 8
  %v503 = vpop.permute.xlu0 %502
  %504 = vrot.lane.b32.xlu0 %v291, 8
  %v505 = vpop.permute.xlu0 %504
  %506 = vrot.lane.b32.xlu0 %v298, 8
  %v507 = vpop.permute.xlu0 %506
  %508 = vrot.lane.b32.xlu0 %v305, 8
  %v509 = vpop.permute.xlu0 %508
  %510 = vrot.lane.b32.xlu0 %v312, 8
  %v511 = vpop.permute.xlu0 %510
  %512 = vrot.lane.b32.xlu0 %v319, 8
  %v513 = vpop.permute.xlu0 %512
  %514 = vrot.lane.b32.xlu0 %v326, 8
  %v515 = vpop.permute.xlu0 %514
  %516 = vrot.lane.b32.xlu0 %v333, 8
  %v517 = vpop.permute.xlu0 %516
  %518 = vrot.lane.b32.xlu0 %v340, 8
  %v519 = vpop.permute.xlu0 %518
  %520 = vrot.lane.b32.xlu0 %v347, 8
  %v521 = vpop.permute.xlu0 %520
  %522 = vrot.lane.b32.xlu0 %v354, 8
  %v523 = vpop.permute.xlu0 %522
  %524 = vrot.lane.b32.xlu0 %v361, 8
  %v525 = vpop.permute.xlu0 %524
  %526 = vrot.lane.b32.xlu0 %v368, 8
  %v527 = vpop.permute.xlu0 %526
  %528 = vrot.lane.b32.xlu0 %v375, 8
  %v529 = vpop.permute.xlu0 %528
  %530 = vrot.lane.b32.xlu0 %v382, 8
  %v531 = vpop.permute.xlu0 %530
  %532 = vrot.lane.b32.xlu0 %v389, 8
  %v533 = vpop.permute.xlu0 %532
  %534 = vrot.lane.b32.xlu0 %v396, 8
  %v535 = vpop.permute.xlu0 %534
  %536 = vrot.lane.b32.xlu0 %v403, 8
  %v537 = vpop.permute.xlu0 %536
  %538 = vrot.lane.b32.xlu0 %v410, 8
  %v539 = vpop.permute.xlu0 %538
  %540 = vrot.lane.b32.xlu0 %v417, 8
  %v541 = vpop.permute.xlu0 %540
  %542 = vrot.lane.b32.xlu0 %v424, 8
  %v543 = vpop.permute.xlu0 %542
  %544 = vrot.lane.b32.xlu0 %v431, 8
  %v545 = vpop.permute.xlu0 %544
  %546 = vrot.lane.b32.xlu0 %v438, 8
  %v547 = vpop.permute.xlu0 %546
  %548 = vrot.lane.b32.xlu0 %v445, 8
  %v549 = vpop.permute.xlu0 %548
  %550 = vrot.lane.b32.xlu0 %v452, 8
  %v551 = vpop.permute.xlu0 %550
  %552 = vrot.lane.b32.xlu0 %v459, 8
  %v553 = vpop.permute.xlu0 %552
  %554 = vrot.lane.b32.xlu0 %v466, 8
  %v555 = vpop.permute.xlu0 %554
  %556 = vrot.lane.b32.xlu0 %v473, 8
  %v557 = vpop.permute.xlu0 %556
  %558 = vrot.lane.b32.xlu0 %v480, 8
  %v559 = vpop.permute.xlu0 %558
  %560 = vrot.lane.b32.xlu0 %v487, 8
  %v561 = vpop.permute.xlu0 %560
  %562 = vrot.lane.b32.xlu0 %v494, 8
  %v563 = vpop.permute.xlu0 %562
  %564 = vrot.lane.b32.xlu0 %v501, 8
  %v565 = vpop.permute.xlu0 %564
  %v568 = vunpack.c.l.b16 %v78
  %v569 = vunpack.c.l.b16 %v114
  %v570 = vpack.c.b16 %v184, %v184
  %v571 = vpack.c.b16 %v186, %v186
  %v572 = vpack.c.b16 %v188, %v188
  %v573 = vpack.c.b16 %v190, %v190
  %v574 = vpack.c.b16 %v192, %v192
  %v575 = vpack.c.b16 %v194, %v194
  %v576 = vpack.c.b16 %v196, %v196
  %v577 = vpack.c.b16 %v198, %v198
  %v578 = vpack.c.b16 %v200, %v200
  %v579 = vpack.c.b16 %v202, %v202
  %v580 = vpack.c.b16 %v204, %v204
  %v581 = vpack.c.b16 %v206, %v206
  %v582 = vpack.c.b16 %v208, %v208
  %v583 = vpack.c.b16 %v210, %v210
  %v584 = vpack.c.b16 %v212, %v212
  %v585 = vpack.c.b16 %v568, %v568
  %v586 = vpack.c.b16 %v216, %v216
  %v587 = vpack.c.b16 %v218, %v218
  %v588 = vpack.c.b16 %v220, %v220
  %v589 = vpack.c.b16 %v222, %v222
  %v590 = vpack.c.b16 %v224, %v224
  %v591 = vpack.c.b16 %v226, %v226
  %v592 = vpack.c.b16 %v228, %v228
  %v593 = vpack.c.b16 %v230, %v230
  %v594 = vpack.c.b16 %v232, %v232
  %v595 = vpack.c.b16 %v234, %v234
  %v596 = vpack.c.b16 %v236, %v236
  %v597 = vpack.c.b16 %v238, %v238
  %v598 = vpack.c.b16 %v240, %v240
  %v599 = vpack.c.b16 %v242, %v242
  %v600 = vpack.c.b16 %v244, %v244
  %v601 = vpack.c.b16 %v569, %v569
  %602 = vrot.lane.b32.xlu0 %v570, 16
  %v603 = vpop.permute.xlu0 %602
  %604 = vrot.lane.b32.xlu0 %v571, 16
  %v605 = vpop.permute.xlu0 %604
  %606 = vrot.lane.b32.xlu0 %v572, 16
  %v607 = vpop.permute.xlu0 %606
  %608 = vrot.lane.b32.xlu0 %v573, 16
  %v609 = vpop.permute.xlu0 %608
  %610 = vrot.lane.b32.xlu0 %v574, 16
  %v611 = vpop.permute.xlu0 %610
  %612 = vrot.lane.b32.xlu0 %v575, 16
  %v613 = vpop.permute.xlu0 %612
  %614 = vrot.lane.b32.xlu0 %v576, 16
  %v615 = vpop.permute.xlu0 %614
  %616 = vrot.lane.b32.xlu0 %v577, 16
  %v617 = vpop.permute.xlu0 %616
  %618 = vrot.lane.b32.xlu0 %v578, 16
  %v619 = vpop.permute.xlu0 %618
  %620 = vrot.lane.b32.xlu0 %v579, 16
  %v621 = vpop.permute.xlu0 %620
  %622 = vrot.lane.b32.xlu0 %v580, 16
  %v623 = vpop.permute.xlu0 %622
  %624 = vrot.lane.b32.xlu0 %v581, 16
  %v625 = vpop.permute.xlu0 %624
  %626 = vrot.lane.b32.xlu0 %v582, 16
  %v627 = vpop.permute.xlu0 %626
  %628 = vrot.lane.b32.xlu0 %v583, 16
  %v629 = vpop.permute.xlu0 %628
  %630 = vrot.lane.b32.xlu0 %v584, 16
  %v631 = vpop.permute.xlu0 %630
  %632 = vrot.lane.b32.xlu0 %v585, 16
  %v633 = vpop.permute.xlu0 %632
  %634 = vrot.lane.b32.xlu0 %v586, 16
  %v635 = vpop.permute.xlu0 %634
  %636 = vrot.lane.b32.xlu0 %v587, 16
  %v637 = vpop.permute.xlu0 %636
  %638 = vrot.lane.b32.xlu0 %v588, 16
  %v639 = vpop.permute.xlu0 %638
  %640 = vrot.lane.b32.xlu0 %v589, 16
  %v641 = vpop.permute.xlu0 %640
  %642 = vrot.lane.b32.xlu0 %v590, 16
  %v643 = vpop.permute.xlu0 %642
  %644 = vrot.lane.b32.xlu0 %v591, 16
  %v645 = vpop.permute.xlu0 %644
  %646 = vrot.lane.b32.xlu0 %v592, 16
  %v647 = vpop.permute.xlu0 %646
  %648 = vrot.lane.b32.xlu0 %v593, 16
  %v649 = vpop.permute.xlu0 %648
  %650 = vrot.lane.b32.xlu0 %v594, 16
  %v651 = vpop.permute.xlu0 %650
  %652 = vrot.lane.b32.xlu0 %v595, 16
  %v653 = vpop.permute.xlu0 %652
  %654 = vrot.lane.b32.xlu0 %v596, 16
  %v655 = vpop.permute.xlu0 %654
  %656 = vrot.lane.b32.xlu0 %v597, 16
  %v657 = vpop.permute.xlu0 %656
  %658 = vrot.lane.b32.xlu0 %v598, 16
  %v659 = vpop.permute.xlu0 %658
  %660 = vrot.lane.b32.xlu0 %v599, 16
  %v661 = vpop.permute.xlu0 %660
  %662 = vrot.lane.b32.xlu0 %v600, 16
  %v663 = vpop.permute.xlu0 %662
  %664 = vrot.lane.b32.xlu0 %v601, 16
  %v665 = vpop.permute.xlu0 %664
  %v668 = vunpack.c.l.b16 %v79
  %v669 = vunpack.c.l.b16 %v115
  %v670 = vpack.c.b16 %v668, %v568
  %v671 = vpack.c.b16 %v669, %v569
  %v673 = vshrl.u32 %v670, 16
  %v675 = vshll.u32 %v670, 16
  %v677 = vrot.slane %v675, 1
  %v678 = vor.u32 %v673, %v677
  %v680 = vshrl.u32 %v671, 16
  %v682 = vshll.u32 %v671, 16
  %v684 = vrot.slane %v682, 1
  %v685 = vor.u32 %v680, %v684
  %686 = vrot.lane.b32.xlu0 %v291, 24
  %v687 = vpop.permute.xlu0 %686
  %688 = vrot.lane.b32.xlu0 %v298, 24
  %v689 = vpop.permute.xlu0 %688
  %690 = vrot.lane.b32.xlu0 %v305, 24
  %v691 = vpop.permute.xlu0 %690
  %692 = vrot.lane.b32.xlu0 %v312, 24
  %v693 = vpop.permute.xlu0 %692
  %694 = vrot.lane.b32.xlu0 %v319, 24
  %v695 = vpop.permute.xlu0 %694
  %696 = vrot.lane.b32.xlu0 %v326, 24
  %v697 = vpop.permute.xlu0 %696
  %698 = vrot.lane.b32.xlu0 %v333, 24
  %v699 = vpop.permute.xlu0 %698
  %700 = vrot.lane.b32.xlu0 %v340, 24
  %v701 = vpop.permute.xlu0 %700
  %702 = vrot.lane.b32.xlu0 %v347, 24
  %v703 = vpop.permute.xlu0 %702
  %704 = vrot.lane.b32.xlu0 %v354, 24
  %v705 = vpop.permute.xlu0 %704
  %706 = vrot.lane.b32.xlu0 %v361, 24
  %v707 = vpop.permute.xlu0 %706
  %708 = vrot.lane.b32.xlu0 %v368, 24
  %v709 = vpop.permute.xlu0 %708
  %710 = vrot.lane.b32.xlu0 %v375, 24
  %v711 = vpop.permute.xlu0 %710
  %712 = vrot.lane.b32.xlu0 %v382, 24
  %v713 = vpop.permute.xlu0 %712
  %714 = vrot.lane.b32.xlu0 %v389, 24
  %v715 = vpop.permute.xlu0 %714
  %716 = vrot.lane.b32.xlu0 %v678, 24
  %v717 = vpop.permute.xlu0 %716
  %718 = vrot.lane.b32.xlu0 %v403, 24
  %v719 = vpop.permute.xlu0 %718
  %720 = vrot.lane.b32.xlu0 %v410, 24
  %v721 = vpop.permute.xlu0 %720
  %722 = vrot.lane.b32.xlu0 %v417, 24
  %v723 = vpop.permute.xlu0 %722
  %724 = vrot.lane.b32.xlu0 %v424, 24
  %v725 = vpop.permute.xlu0 %724
  %726 = vrot.lane.b32.xlu0 %v431, 24
  %v727 = vpop.permute.xlu0 %726
  %728 = vrot.lane.b32.xlu0 %v438, 24
  %v729 = vpop.permute.xlu0 %728
  %730 = vrot.lane.b32.xlu0 %v445, 24
  %v731 = vpop.permute.xlu0 %730
  %732 = vrot.lane.b32.xlu0 %v452, 24
  %v733 = vpop.permute.xlu0 %732
  %734 = vrot.lane.b32.xlu0 %v459, 24
  %v735 = vpop.permute.xlu0 %734
  %736 = vrot.lane.b32.xlu0 %v466, 24
  %v737 = vpop.permute.xlu0 %736
  %738 = vrot.lane.b32.xlu0 %v473, 24
  %v739 = vpop.permute.xlu0 %738
  %740 = vrot.lane.b32.xlu0 %v480, 24
  %v741 = vpop.permute.xlu0 %740
  %742 = vrot.lane.b32.xlu0 %v487, 24
  %v743 = vpop.permute.xlu0 %742
  %744 = vrot.lane.b32.xlu0 %v494, 24
  %v745 = vpop.permute.xlu0 %744
  %746 = vrot.lane.b32.xlu0 %v501, 24
  %v747 = vpop.permute.xlu0 %746
  %748 = vrot.lane.b32.xlu0 %v685, 24
  %v749 = vpop.permute.xlu0 %748
  %v752 = vunpack.c.l.b16 %v80
  %v753 = vunpack.c.l.b16 %v116
  %v754 = vpack.c.b16 %v752, %v752
  %v755 = vpack.c.b16 %v753, %v753
  %756 = vrot.lane.b32.xlu0 %v571, 32
  %v757 = vpop.permute.xlu0 %756
  %758 = vrot.lane.b32.xlu0 %v572, 32
  %v759 = vpop.permute.xlu0 %758
  %760 = vrot.lane.b32.xlu0 %v573, 32
  %v761 = vpop.permute.xlu0 %760
  %762 = vrot.lane.b32.xlu0 %v574, 32
  %v763 = vpop.permute.xlu0 %762
  %764 = vrot.lane.b32.xlu0 %v575, 32
  %v765 = vpop.permute.xlu0 %764
  %766 = vrot.lane.b32.xlu0 %v576, 32
  %v767 = vpop.permute.xlu0 %766
  %768 = vrot.lane.b32.xlu0 %v577, 32
  %v769 = vpop.permute.xlu0 %768
  %770 = vrot.lane.b32.xlu0 %v578, 32
  %v771 = vpop.permute.xlu0 %770
  %772 = vrot.lane.b32.xlu0 %v579, 32
  %v773 = vpop.permute.xlu0 %772
  %774 = vrot.lane.b32.xlu0 %v580, 32
  %v775 = vpop.permute.xlu0 %774
  %776 = vrot.lane.b32.xlu0 %v581, 32
  %v777 = vpop.permute.xlu0 %776
  %778 = vrot.lane.b32.xlu0 %v582, 32
  %v779 = vpop.permute.xlu0 %778
  %780 = vrot.lane.b32.xlu0 %v583, 32
  %v781 = vpop.permute.xlu0 %780
  %782 = vrot.lane.b32.xlu0 %v584, 32
  %v783 = vpop.permute.xlu0 %782
  %784 = vrot.lane.b32.xlu0 %v585, 32
  %v785 = vpop.permute.xlu0 %784
  %786 = vrot.lane.b32.xlu0 %v754, 32
  %v787 = vpop.permute.xlu0 %786
  %788 = vrot.lane.b32.xlu0 %v587, 32
  %v789 = vpop.permute.xlu0 %788
  %790 = vrot.lane.b32.xlu0 %v588, 32
  %v791 = vpop.permute.xlu0 %790
  %792 = vrot.lane.b32.xlu0 %v589, 32
  %v793 = vpop.permute.xlu0 %792
  %794 = vrot.lane.b32.xlu0 %v590, 32
  %v795 = vpop.permute.xlu0 %794
  %796 = vrot.lane.b32.xlu0 %v591, 32
  %v797 = vpop.permute.xlu0 %796
  %798 = vrot.lane.b32.xlu0 %v592, 32
  %v799 = vpop.permute.xlu0 %798
  %800 = vrot.lane.b32.xlu0 %v593, 32
  %v801 = vpop.permute.xlu0 %800
  %802 = vrot.lane.b32.xlu0 %v594, 32
  %v803 = vpop.permute.xlu0 %802
  %804 = vrot.lane.b32.xlu0 %v595, 32
  %v805 = vpop.permute.xlu0 %804
  %806 = vrot.lane.b32.xlu0 %v596, 32
  %v807 = vpop.permute.xlu0 %806
  %808 = vrot.lane.b32.xlu0 %v597, 32
  %v809 = vpop.permute.xlu0 %808
  %810 = vrot.lane.b32.xlu0 %v598, 32
  %v811 = vpop.permute.xlu0 %810
  %812 = vrot.lane.b32.xlu0 %v599, 32
  %v813 = vpop.permute.xlu0 %812
  %814 = vrot.lane.b32.xlu0 %v600, 32
  %v815 = vpop.permute.xlu0 %814
  %816 = vrot.lane.b32.xlu0 %v601, 32
  %v817 = vpop.permute.xlu0 %816
  %818 = vrot.lane.b32.xlu0 %v755, 32
  %v819 = vpop.permute.xlu0 %818
  %v822 = vunpack.c.l.b16 %v81
  %v823 = vunpack.c.l.b16 %v117
  %v824 = vpack.c.b16 %v822, %v752
  %v825 = vpack.c.b16 %v823, %v753
  %v827 = vshrl.u32 %v824, 16
  %v829 = vshll.u32 %v824, 16
  %v831 = vrot.slane %v829, 1
  %v832 = vor.u32 %v827, %v831
  %v834 = vshrl.u32 %v825, 16
  %v836 = vshll.u32 %v825, 16
  %v838 = vrot.slane %v836, 1
  %v839 = vor.u32 %v834, %v838
  %840 = vrot.lane.b32.xlu0 %v298, 40
  %v841 = vpop.permute.xlu0 %840
  %842 = vrot.lane.b32.xlu0 %v305, 40
  %v843 = vpop.permute.xlu0 %842
  %844 = vrot.lane.b32.xlu0 %v312, 40
  %v845 = vpop.permute.xlu0 %844
  %846 = vrot.lane.b32.xlu0 %v319, 40
  %v847 = vpop.permute.xlu0 %846
  %848 = vrot.lane.b32.xlu0 %v326, 40
  %v849 = vpop.permute.xlu0 %848
  %850 = vrot.lane.b32.xlu0 %v333, 40
  %v851 = vpop.permute.xlu0 %850
  %852 = vrot.lane.b32.xlu0 %v340, 40
  %v853 = vpop.permute.xlu0 %852
  %854 = vrot.lane.b32.xlu0 %v347, 40
  %v855 = vpop.permute.xlu0 %854
  %856 = vrot.lane.b32.xlu0 %v354, 40
  %v857 = vpop.permute.xlu0 %856
  %858 = vrot.lane.b32.xlu0 %v361, 40
  %v859 = vpop.permute.xlu0 %858
  %860 = vrot.lane.b32.xlu0 %v368, 40
  %v861 = vpop.permute.xlu0 %860
  %862 = vrot.lane.b32.xlu0 %v375, 40
  %v863 = vpop.permute.xlu0 %862
  %864 = vrot.lane.b32.xlu0 %v382, 40
  %v865 = vpop.permute.xlu0 %864
  %866 = vrot.lane.b32.xlu0 %v389, 40
  %v867 = vpop.permute.xlu0 %866
  %868 = vrot.lane.b32.xlu0 %v678, 40
  %v869 = vpop.permute.xlu0 %868
  %870 = vrot.lane.b32.xlu0 %v832, 40
  %v871 = vpop.permute.xlu0 %870
  %872 = vrot.lane.b32.xlu0 %v410, 40
  %v873 = vpop.permute.xlu0 %872
  %874 = vrot.lane.b32.xlu0 %v417, 40
  %v875 = vpop.permute.xlu0 %874
  %876 = vrot.lane.b32.xlu0 %v424, 40
  %v877 = vpop.permute.xlu0 %876
  %878 = vrot.lane.b32.xlu0 %v431, 40
  %v879 = vpop.permute.xlu0 %878
  %880 = vrot.lane.b32.xlu0 %v438, 40
  %v881 = vpop.permute.xlu0 %880
  %882 = vrot.lane.b32.xlu0 %v445, 40
  %v883 = vpop.permute.xlu0 %882
  %884 = vrot.lane.b32.xlu0 %v452, 40
  %v885 = vpop.permute.xlu0 %884
  %886 = vrot.lane.b32.xlu0 %v459, 40
  %v887 = vpop.permute.xlu0 %886
  %888 = vrot.lane.b32.xlu0 %v466, 40
  %v889 = vpop.permute.xlu0 %888
  %890 = vrot.lane.b32.xlu0 %v473, 40
  %v891 = vpop.permute.xlu0 %890
  %892 = vrot.lane.b32.xlu0 %v480, 40
  %v893 = vpop.permute.xlu0 %892
  %894 = vrot.lane.b32.xlu0 %v487, 40
  %v895 = vpop.permute.xlu0 %894
  %896 = vrot.lane.b32.xlu0 %v494, 40
  %v897 = vpop.permute.xlu0 %896
  %898 = vrot.lane.b32.xlu0 %v501, 40
  %v899 = vpop.permute.xlu0 %898
  %900 = vrot.lane.b32.xlu0 %v685, 40
  %v901 = vpop.permute.xlu0 %900
  %902 = vrot.lane.b32.xlu0 %v839, 40
  %v903 = vpop.permute.xlu0 %902
  %vm904 = vcmask 64512
  %v907 = vsel %vm904, %v46, %v503
  %v910 = vsel %vm904, %v48, %v505
  %v913 = vsel %vm904, %v50, %v507
  %v916 = vsel %vm904, %v52, %v509
  %v919 = vsel %vm904, %v54, %v511
  %v922 = vsel %vm904, %v56, %v513
  %v925 = vsel %vm904, %v58, %v515
  %v928 = vsel %vm904, %v60, %v517
  %v931 = vsel %vm904, %v62, %v519
  %v934 = vsel %vm904, %v64, %v521
  %v937 = vsel %vm904, %v66, %v523
  %v940 = vsel %vm904, %v68, %v525
  %v943 = vsel %vm904, %v70, %v527
  %v946 = vsel %vm904, %v72, %v529
  %v949 = vsel %vm904, %v74, %v531
  %v952 = vsel %vm904, %v76, %v533
  %v955 = vsel %vm904, %v82, %v535
  %v958 = vsel %vm904, %v84, %v537
  %v961 = vsel %vm904, %v86, %v539
  %v964 = vsel %vm904, %v88, %v541
  %v967 = vsel %vm904, %v90, %v543
  %v970 = vsel %vm904, %v92, %v545
  %v973 = vsel %vm904, %v94, %v547
  %v976 = vsel %vm904, %v96, %v549
  %v979 = vsel %vm904, %v98, %v551
  %v982 = vsel %vm904, %v100, %v553
  %v985 = vsel %vm904, %v102, %v555
  %v988 = vsel %vm904, %v104, %v557
  %v991 = vsel %vm904, %v106, %v559
  %v994 = vsel %vm904, %v108, %v561
  %v997 = vsel %vm904, %v110, %v563
  %v1000 = vsel %vm904, %v112, %v565
  %vm1001 = vcmask 130048
  %v1003 = vsel %vm1001, %v907, %v603
  %v1005 = vsel %vm1001, %v910, %v605
  %v1007 = vsel %vm1001, %v913, %v607
  %v1009 = vsel %vm1001, %v916, %v609
  %v1011 = vsel %vm1001, %v919, %v611
  %v1013 = vsel %vm1001, %v922, %v613
  %v1015 = vsel %vm1001, %v925, %v615
  %v1017 = vsel %vm1001, %v928, %v617
  %v1019 = vsel %vm1001, %v931, %v619
  %v1021 = vsel %vm1001, %v934, %v621
  %v1023 = vsel %vm1001, %v937, %v623
  %v1025 = vsel %vm1001, %v940, %v625
  %v1027 = vsel %vm1001, %v943, %v627
  %v1029 = vsel %vm1001, %v946, %v629
  %v1031 = vsel %vm1001, %v949, %v631
  %v1033 = vsel %vm1001, %v952, %v633
  %v1035 = vsel %vm1001, %v955, %v635
  %v1037 = vsel %vm1001, %v958, %v637
  %v1039 = vsel %vm1001, %v961, %v639
  %v1041 = vsel %vm1001, %v964, %v641
  %v1043 = vsel %vm1001, %v967, %v643
  %v1045 = vsel %vm1001, %v970, %v645
  %v1047 = vsel %vm1001, %v973, %v647
  %v1049 = vsel %vm1001, %v976, %v649
  %v1051 = vsel %vm1001, %v979, %v651
  %v1053 = vsel %vm1001, %v982, %v653
  %v1055 = vsel %vm1001, %v985, %v655
  %v1057 = vsel %vm1001, %v988, %v657
  %v1059 = vsel %vm1001, %v991, %v659
  %v1061 = vsel %vm1001, %v994, %v661
  %v1063 = vsel %vm1001, %v997, %v663
  %v1065 = vsel %vm1001, %v1000, %v665
  %vm1066 = vcmask 195584
  %v1068 = vsel %vm1066, %v1003, %v687
  %v1070 = vsel %vm1066, %v1005, %v689
  %v1072 = vsel %vm1066, %v1007, %v691
  %v1074 = vsel %vm1066, %v1009, %v693
  %v1076 = vsel %vm1066, %v1011, %v695
  %v1078 = vsel %vm1066, %v1013, %v697
  %v1080 = vsel %vm1066, %v1015, %v699
  %v1082 = vsel %vm1066, %v1017, %v701
  %v1084 = vsel %vm1066, %v1019, %v703
  %v1086 = vsel %vm1066, %v1021, %v705
  %v1088 = vsel %vm1066, %v1023, %v707
  %v1090 = vsel %vm1066, %v1025, %v709
  %v1092 = vsel %vm1066, %v1027, %v711
  %v1094 = vsel %vm1066, %v1029, %v713
  %v1096 = vsel %vm1066, %v1031, %v715
  %v1098 = vsel %vm1066, %v1033, %v717
  %v1100 = vsel %vm1066, %v1035, %v719
  %v1102 = vsel %vm1066, %v1037, %v721
  %v1104 = vsel %vm1066, %v1039, %v723
  %v1106 = vsel %vm1066, %v1041, %v725
  %v1108 = vsel %vm1066, %v1043, %v727
  %v1110 = vsel %vm1066, %v1045, %v729
  %v1112 = vsel %vm1066, %v1047, %v731
  %v1114 = vsel %vm1066, %v1049, %v733
  %v1116 = vsel %vm1066, %v1051, %v735
  %v1118 = vsel %vm1066, %v1053, %v737
  %v1120 = vsel %vm1066, %v1055, %v739
  %v1122 = vsel %vm1066, %v1057, %v741
  %v1124 = vsel %vm1066, %v1059, %v743
  %v1126 = vsel %vm1066, %v1061, %v745
  %v1128 = vsel %vm1066, %v1063, %v747
  %v1130 = vsel %vm1066, %v1065, %v749
  %vm1131 = vcmask 261120
  %v1133 = vsel %vm1131, %v1068, %v757
  %v1135 = vsel %vm1131, %v1070, %v759
  %v1137 = vsel %vm1131, %v1072, %v761
  %v1139 = vsel %vm1131, %v1074, %v763
  %v1141 = vsel %vm1131, %v1076, %v765
  %v1143 = vsel %vm1131, %v1078, %v767
  %v1145 = vsel %vm1131, %v1080, %v769
  %v1147 = vsel %vm1131, %v1082, %v771
  %v1149 = vsel %vm1131, %v1084, %v773
  %v1151 = vsel %vm1131, %v1086, %v775
  %v1153 = vsel %vm1131, %v1088, %v777
  %v1155 = vsel %vm1131, %v1090, %v779
  %v1157 = vsel %vm1131, %v1092, %v781
  %v1159 = vsel %vm1131, %v1094, %v783
  %v1161 = vsel %vm1131, %v1096, %v785
  %v1163 = vsel %vm1131, %v1098, %v787
  %v1165 = vsel %vm1131, %v1100, %v789
  %v1167 = vsel %vm1131, %v1102, %v791
  %v1169 = vsel %vm1131, %v1104, %v793
  %v1171 = vsel %vm1131, %v1106, %v795
  %v1173 = vsel %vm1131, %v1108, %v797
  %v1175 = vsel %vm1131, %v1110, %v799
  %v1177 = vsel %vm1131, %v1112, %v801
  %v1179 = vsel %vm1131, %v1114, %v803
  %v1181 = vsel %vm1131, %v1116, %v805
  %v1183 = vsel %vm1131, %v1118, %v807
  %v1185 = vsel %vm1131, %v1120, %v809
  %v1187 = vsel %vm1131, %v1122, %v811
  %v1189 = vsel %vm1131, %v1124, %v813
  %v1191 = vsel %vm1131, %v1126, %v815
  %v1193 = vsel %vm1131, %v1128, %v817
  %v1195 = vsel %vm1131, %v1130, %v819
  %vm1196 = vcmask 326656
  %v1198 = vsel %vm1196, %v1133, %v841
  %v1200 = vsel %vm1196, %v1135, %v843
  %v1202 = vsel %vm1196, %v1137, %v845
  %v1204 = vsel %vm1196, %v1139, %v847
  %v1206 = vsel %vm1196, %v1141, %v849
  %v1208 = vsel %vm1196, %v1143, %v851
  %v1210 = vsel %vm1196, %v1145, %v853
  %v1212 = vsel %vm1196, %v1147, %v855
  %v1214 = vsel %vm1196, %v1149, %v857
  %v1216 = vsel %vm1196, %v1151, %v859
  %v1218 = vsel %vm1196, %v1153, %v861
  %v1220 = vsel %vm1196, %v1155, %v863
  %v1222 = vsel %vm1196, %v1157, %v865
  %v1224 = vsel %vm1196, %v1159, %v867
  %v1226 = vsel %vm1196, %v1161, %v869
  %v1228 = vsel %vm1196, %v1163, %v871
  %v1230 = vsel %vm1196, %v1165, %v873
  %v1232 = vsel %vm1196, %v1167, %v875
  %v1234 = vsel %vm1196, %v1169, %v877
  %v1236 = vsel %vm1196, %v1171, %v879
  %v1238 = vsel %vm1196, %v1173, %v881
  %v1240 = vsel %vm1196, %v1175, %v883
  %v1242 = vsel %vm1196, %v1177, %v885
  %v1244 = vsel %vm1196, %v1179, %v887
  %v1246 = vsel %vm1196, %v1181, %v889
  %v1248 = vsel %vm1196, %v1183, %v891
  %v1250 = vsel %vm1196, %v1185, %v893
  %v1252 = vsel %vm1196, %v1187, %v895
  %v1254 = vsel %vm1196, %v1189, %v897
  %v1256 = vsel %vm1196, %v1191, %v899
  %v1258 = vsel %vm1196, %v1193, %v901
  %v1260 = vsel %vm1196, %v1195, %v903
  %v1261 = vld [vmem:[%s1] sm:$0xf]
  %v1262 = vld [vmem:[%s1 + $0x4] sm:$0xf]
  %v1263 = vld [vmem:[%s1 + $0x8] sm:$0xf]
  %v1264 = vld [vmem:[%s1 + $0xc] sm:$0xf]
  %v1265 = vld [vmem:[%s1 + $0x10] sm:$0xf]
  %v1266 = vld [vmem:[%s1 + $0x14] sm:$0xf]
  %v1299 = vunpack.c.l.b16 %v1198
  %v1300 = vunpack.c.l.b16 %v1200
  %v1301 = vunpack.c.l.b16 %v1202
  %v1302 = vunpack.c.l.b16 %v1204
  %v1303 = vunpack.c.l.b16 %v1206
  %v1304 = vunpack.c.l.b16 %v1208
  %v1305 = vunpack.c.l.b16 %v1210
  %v1306 = vunpack.c.l.b16 %v1212
  %v1307 = vunpack.c.l.b16 %v1214
  %v1308 = vunpack.c.l.b16 %v1216
  %v1309 = vunpack.c.l.b16 %v1218
  %v1310 = vunpack.c.l.b16 %v1220
  %v1311 = vunpack.c.l.b16 %v1222
  %v1312 = vunpack.c.l.b16 %v1224
  %v1313 = vunpack.c.l.b16 %v1226
  %v1314 = vunpack.c.l.b16 %v1228
  %v1315 = vunpack.c.l.b16 %v1230
  %v1316 = vunpack.c.l.b16 %v1232
  %v1317 = vunpack.c.l.b16 %v1234
  %v1318 = vunpack.c.l.b16 %v1236
  %v1319 = vunpack.c.l.b16 %v1238
  %v1320 = vunpack.c.l.b16 %v1240
  %v1321 = vunpack.c.l.b16 %v1242
  %v1322 = vunpack.c.l.b16 %v1244
  %v1323 = vunpack.c.l.b16 %v1246
  %v1324 = vunpack.c.l.b16 %v1248
  %v1325 = vunpack.c.l.b16 %v1250
  %v1326 = vunpack.c.l.b16 %v1252
  %v1327 = vunpack.c.l.b16 %v1254
  %v1328 = vunpack.c.l.b16 %v1256
  %v1329 = vunpack.c.l.b16 %v1258
  %v1330 = vunpack.c.l.b16 %v1260
  %v1331 = vpack.c.b16 %v1300, %v1299
  %v1332 = vpack.c.b16 %v1302, %v1301
  %v1333 = vpack.c.b16 %v1304, %v1303
  %v1334 = vpack.c.b16 %v1306, %v1305
  %v1335 = vpack.c.b16 %v1308, %v1307
  %v1336 = vpack.c.b16 %v1310, %v1309
  %v1337 = vpack.c.b16 %v1312, %v1311
  %v1338 = vpack.c.b16 %v1314, %v1313
  %v1339 = vpack.c.b16 %v1316, %v1315
  %v1340 = vpack.c.b16 %v1318, %v1317
  %v1341 = vpack.c.b16 %v1320, %v1319
  %v1342 = vpack.c.b16 %v1322, %v1321
  %v1343 = vpack.c.b16 %v1324, %v1323
  %v1344 = vpack.c.b16 %v1326, %v1325
  %v1345 = vpack.c.b16 %v1328, %v1327
  %v1346 = vpack.c.b16 %v1330, %v1329
  %v1353 = vunpack.c.l.b16 %v1261
  %v1354 = vunpack.c.l.b16 %v1262
  %v1355 = vunpack.c.l.b16 %v1263
  %v1356 = vunpack.c.l.b16 %v1264
  %v1357 = vunpack.c.l.b16 %v1265
  %v1358 = vunpack.c.l.b16 %v1266
  %v1359 = vpack.c.b16 %v1354, %v1353
  %v1360 = vpack.c.b16 %v1356, %v1355
  %v1361 = vpack.c.b16 %v1358, %v1357
  %vm1365 = vcmask 392192
  %v1367 = vsel %vm1365, %v1331, 0
  %v1370 = vsel %vm1365, %v1332, 0
  %v1373 = vsel %vm1365, %v1333, 0
  %v1376 = vsel %vm1365, %v1334, 0
  %v1379 = vsel %vm1365, %v1335, 0
  %v1382 = vsel %vm1365, %v1336, 0
  %v1385 = vsel %vm1365, %v1337, 0
  %v1388 = vsel %vm1365, %v1338, 0
  %v1391 = vsel %vm1365, %v1339, 0
  %v1394 = vsel %vm1365, %v1340, 0
  %v1397 = vsel %vm1365, %v1341, 0
  %v1400 = vsel %vm1365, %v1342, 0
  %v1403 = vsel %vm1365, %v1343, 0
  %v1406 = vsel %vm1365, %v1344, 0
  %v1409 = vsel %vm1365, %v1345, 0
  %v1412 = vsel %vm1365, %v1346, 0
  %1414 = vmatprep.subr.bf16.mxu0 0
  %1415 = vmatpush1.bf16.msra.mxu0 %v1359
  %1416 = vmatprep.subr.bf16.mxu0 0
  %1417 = vmatpush1.bf16.msra.mxu0 %v1360
  %1418 = vmatprep.subr.bf16.mxu0 0
  %1419 = vmatpush1.bf16.msra.mxu0 %v1361
  %1420 = vmatprep.subr.bf16.mxu0 0
  %1421 = vmatpush1.bf16.msra.mxu0 0
  %1422 = vmatprep.subr.bf16.mxu0 0
  %1423 = vmatpush1.bf16.msra.mxu0 0
  %1424 = vmatprep.subr.bf16.mxu0 0
  %1425 = vmatpush1.bf16.msra.mxu0 0
  %1426 = vmatprep.subr.bf16.mxu0 0
  %1427 = vmatpush1.bf16.msra.mxu0 0
  %1428 = vmatprep.subr.bf16.mxu0 0
  %1429 = vmatpush1.bf16.msra.mxu0 0
  %1430 = vmatprep.subr.bf16.mxu0 0
  %1431 = vmatpush1.bf16.msra.mxu0 0
  %1432 = vmatprep.subr.bf16.mxu0 0
  %1433 = vmatpush1.bf16.msra.mxu0 0
  %1434 = vmatprep.subr.bf16.mxu0 0
  %1435 = vmatpush1.bf16.msra.mxu0 0
  %1436 = vmatprep.subr.bf16.mxu0 0
  %1437 = vmatpush1.bf16.msra.mxu0 0
  %1438 = vmatprep.subr.bf16.mxu0 0
  %1439 = vmatpush1.bf16.msra.mxu0 0
  %1440 = vmatprep.subr.bf16.mxu0 0
  %1441 = vmatpush1.bf16.msra.mxu0 0
  %1442 = vmatprep.subr.bf16.mxu0 0
  %1443 = vmatpush1.bf16.msra.mxu0 0
  %1444 = vmatprep.subr.bf16.mxu0 0
  %1445 = vmatpush1.bf16.msra.mxu0 0
  %1446 = vmatprep.mubr.bf16.mxu0 0
  %1447 = vmatmul.mubr.bf16.gmra.mrb[0].mxu0 %v1367
  %v1448 = vpop.f32.mrb[0].mxu0
  %v1449 = vadd.f32 0.0, %v1448
  %v1450 = vpop.f32.mrb[0].mxu0
  %v1451 = vpop.f32.mrb[0].mxu0
  %v1452 = vadd.f32 0.0, %v1451
  %v1453 = vpop.f32.mrb[0].mxu0
  %1454 = vmatprep.mubr.bf16.mxu0 0
  %1455 = vmatmul.mubr.bf16.gmra.mrb[0].mxu0 %v1370
  %v1456 = vpop.f32.mrb[0].mxu0
  %v1457 = vadd.f32 0.0, %v1456
  %v1458 = vpop.f32.mrb[0].mxu0
  %v1459 = vpop.f32.mrb[0].mxu0
  %v1460 = vadd.f32 0.0, %v1459
  %v1461 = vpop.f32.mrb[0].mxu0
  %1462 = vmatprep.mubr.bf16.mxu0 0
  %1463 = vmatmul.mubr.bf16.gmra.mrb[0].mxu0 %v1373
  %v1464 = vpop.f32.mrb[0].mxu0
  %v1465 = vadd.f32 0.0, %v1464
  %v1466 = vpop.f32.mrb[0].mxu0
  %v1467 = vpop.f32.mrb[0].mxu0
  %v1468 = vadd.f32 0.0, %v1467
  %v1469 = vpop.f32.mrb[0].mxu0
  %1470 = vmatprep.mubr.bf16.mxu0 0
  %1471 = vmatmul.mubr.bf16.gmra.mrb[0].mxu0 %v1376
  %v1472 = vpop.f32.mrb[0].mxu0
  %v1473 = vadd.f32 0.0, %v1472
  %v1474 = vpop.f32.mrb[0].mxu0
  %v1475 = vpop.f32.mrb[0].mxu0
  %v1476 = vadd.f32 0.0, %v1475
  %v1477 = vpop.f32.mrb[0].mxu0
  %1478 = vmatprep.mubr.bf16.mxu0 0
  %1479 = vmatmul.mubr.bf16.gmra.mrb[0].mxu0 %v1379
  %v1480 = vpop.f32.mrb[0].mxu0
  %v1481 = vadd.f32 0.0, %v1480
  %v1482 = vpop.f32.mrb[0].mxu0
  %v1483 = vpop.f32.mrb[0].mxu0
  %v1484 = vadd.f32 0.0, %v1483
  %v1485 = vpop.f32.mrb[0].mxu0
  %1486 = vmatprep.mubr.bf16.mxu0 0
  %1487 = vmatmul.mubr.bf16.gmra.mrb[0].mxu0 %v1382
  %v1488 = vpop.f32.mrb[0].mxu0
  %v1489 = vadd.f32 0.0, %v1488
  %v1490 = vpop.f32.mrb[0].mxu0
  %v1491 = vpop.f32.mrb[0].mxu0
  %v1492 = vadd.f32 0.0, %v1491
  %v1493 = vpop.f32.mrb[0].mxu0
  %1494 = vmatprep.mubr.bf16.mxu0 0
  %1495 = vmatmul.mubr.bf16.gmra.mrb[0].mxu0 %v1385
  %v1496 = vpop.f32.mrb[0].mxu0
  %v1497 = vadd.f32 0.0, %v1496
  %v1498 = vpop.f32.mrb[0].mxu0
  %v1499 = vpop.f32.mrb[0].mxu0
  %v1500 = vadd.f32 0.0, %v1499
  %v1501 = vpop.f32.mrb[0].mxu0
  %1502 = vmatprep.mubr.bf16.mxu0 0
  %1503 = vmatmul.mubr.bf16.gmra.mrb[0].mxu0 %v1388
  %v1504 = vpop.f32.mrb[0].mxu0
  %v1505 = vadd.f32 0.0, %v1504
  %v1506 = vpop.f32.mrb[0].mxu0
  %v1507 = vpop.f32.mrb[0].mxu0
  %v1508 = vadd.f32 0.0, %v1507
  %v1509 = vpop.f32.mrb[0].mxu0
  %1510 = vmatprep.mubr.bf16.mxu0 0
  %1511 = vmatmul.mubr.bf16.gmra.mrb[0].mxu0 %v1391
  %v1512 = vpop.f32.mrb[0].mxu0
  %v1513 = vadd.f32 0.0, %v1512
  %v1514 = vpop.f32.mrb[0].mxu0
  %v1515 = vpop.f32.mrb[0].mxu0
  %v1516 = vadd.f32 0.0, %v1515
  %v1517 = vpop.f32.mrb[0].mxu0
  %1518 = vmatprep.mubr.bf16.mxu0 0
  %1519 = vmatmul.mubr.bf16.gmra.mrb[0].mxu0 %v1394
  %v1520 = vpop.f32.mrb[0].mxu0
  %v1521 = vadd.f32 0.0, %v1520
  %v1522 = vpop.f32.mrb[0].mxu0
  %v1523 = vpop.f32.mrb[0].mxu0
  %v1524 = vadd.f32 0.0, %v1523
  %v1525 = vpop.f32.mrb[0].mxu0
  %1526 = vmatprep.mubr.bf16.mxu0 0
  %1527 = vmatmul.mubr.bf16.gmra.mrb[0].mxu0 %v1397
  %v1528 = vpop.f32.mrb[0].mxu0
  %v1529 = vadd.f32 0.0, %v1528
  %v1530 = vpop.f32.mrb[0].mxu0
  %v1531 = vpop.f32.mrb[0].mxu0
  %v1532 = vadd.f32 0.0, %v1531
  %v1533 = vpop.f32.mrb[0].mxu0
  %1534 = vmatprep.mubr.bf16.mxu0 0
  %1535 = vmatmul.mubr.bf16.gmra.mrb[0].mxu0 %v1400
  %v1536 = vpop.f32.mrb[0].mxu0
  %v1537 = vadd.f32 0.0, %v1536
  %v1538 = vpop.f32.mrb[0].mxu0
  %v1539 = vpop.f32.mrb[0].mxu0
  %v1540 = vadd.f32 0.0, %v1539
  %v1541 = vpop.f32.mrb[0].mxu0
  %1542 = vmatprep.mubr.bf16.mxu0 0
  %1543 = vmatmul.mubr.bf16.gmra.mrb[0].mxu0 %v1403
  %v1544 = vpop.f32.mrb[0].mxu0
  %v1545 = vadd.f32 0.0, %v1544
  %v1546 = vpop.f32.mrb[0].mxu0
  %v1547 = vpop.f32.mrb[0].mxu0
  %v1548 = vadd.f32 0.0, %v1547
  %v1549 = vpop.f32.mrb[0].mxu0
  %1550 = vmatprep.mubr.bf16.mxu0 0
  %1551 = vmatmul.mubr.bf16.gmra.mrb[0].mxu0 %v1406
  %v1552 = vpop.f32.mrb[0].mxu0
  %v1553 = vadd.f32 0.0, %v1552
  %v1554 = vpop.f32.mrb[0].mxu0
  %v1555 = vpop.f32.mrb[0].mxu0
  %v1556 = vadd.f32 0.0, %v1555
  %v1557 = vpop.f32.mrb[0].mxu0
  %1558 = vmatprep.mubr.bf16.mxu0 0
  %1559 = vmatmul.mubr.bf16.gmra.mrb[0].mxu0 %v1409
  %v1560 = vpop.f32.mrb[0].mxu0
  %v1561 = vadd.f32 0.0, %v1560
  %v1562 = vpop.f32.mrb[0].mxu0
  %v1563 = vpop.f32.mrb[0].mxu0
  %v1564 = vadd.f32 0.0, %v1563
  %v1565 = vpop.f32.mrb[0].mxu0
  %1566 = vmatprep.mubr.bf16.mxu0 0
  %1567 = vmatmul.mubr.bf16.gmra.mrb[0].mxu0 %v1412
  %v1568 = vpop.f32.mrb[0].mxu0
  %v1569 = vadd.f32 0.0, %v1568
  %v1570 = vpop.f32.mrb[0].mxu0
  %v1571 = vpop.f32.mrb[0].mxu0
  %v1572 = vadd.f32 0.0, %v1571
  %v1573 = vpop.f32.mrb[0].mxu0
  %1574 = vdwg.mxu0
  %v1575 = vsel %vm1001, %v1449, 0.0
  %v1576 = vsel %vm1001, %v1452, 0.0
  %v1577 = vadd.f32 %v1575, %v1576
  %v1578 = vsel %vm1001, %v1457, 0.0
  %v1579 = vadd.f32 %v1577, %v1578
  %v1580 = vsel %vm1001, %v1460, 0.0
  %v1581 = vadd.f32 %v1579, %v1580
  %v1582 = vsel %vm1001, %v1465, 0.0
  %v1583 = vadd.f32 %v1581, %v1582
  %v1584 = vsel %vm1001, %v1468, 0.0
  %v1585 = vadd.f32 %v1583, %v1584
  %v1586 = vsel %vm1001, %v1473, 0.0
  %v1587 = vadd.f32 %v1585, %v1586
  %v1588 = vsel %vm1001, %v1476, 0.0
  %v1589 = vadd.f32 %v1587, %v1588
  %v1590 = vsel %vm1001, %v1481, 0.0
  %v1591 = vadd.f32 %v1589, %v1590
  %v1592 = vsel %vm1001, %v1484, 0.0
  %v1593 = vadd.f32 %v1591, %v1592
  %v1594 = vsel %vm1001, %v1489, 0.0
  %v1595 = vadd.f32 %v1593, %v1594
  %v1596 = vsel %vm1001, %v1492, 0.0
  %v1597 = vadd.f32 %v1595, %v1596
  %v1598 = vsel %vm1001, %v1497, 0.0
  %v1599 = vadd.f32 %v1597, %v1598
  %v1600 = vsel %vm1001, %v1500, 0.0
  %v1601 = vadd.f32 %v1599, %v1600
  %v1602 = vsel %vm1001, %v1505, 0.0
  %v1603 = vadd.f32 %v1601, %v1602
  %v1604 = vsel %vm1001, %v1508, 0.0
  %v1605 = vadd.f32 %v1603, %v1604
  %v1606 = vsel %vm1001, %v1513, 0.0
  %v1607 = vadd.f32 %v1605, %v1606
  %v1608 = vsel %vm1001, %v1516, 0.0
  %v1609 = vadd.f32 %v1607, %v1608
  %v1610 = vsel %vm1001, %v1521, 0.0
  %v1611 = vadd.f32 %v1609, %v1610
  %v1612 = vsel %vm1001, %v1524, 0.0
  %v1613 = vadd.f32 %v1611, %v1612
  %v1614 = vsel %vm1001, %v1529, 0.0
  %v1615 = vadd.f32 %v1613, %v1614
  %v1616 = vsel %vm1001, %v1532, 0.0
  %v1617 = vadd.f32 %v1615, %v1616
  %v1618 = vsel %vm1001, %v1537, 0.0
  %v1619 = vadd.f32 %v1617, %v1618
  %v1620 = vsel %vm1001, %v1540, 0.0
  %v1621 = vadd.f32 %v1619, %v1620
  %v1622 = vsel %vm1001, %v1545, 0.0
  %v1623 = vadd.f32 %v1621, %v1622
  %v1624 = vsel %vm1001, %v1548, 0.0
  %v1625 = vadd.f32 %v1623, %v1624
  %v1626 = vsel %vm1001, %v1553, 0.0
  %v1627 = vadd.f32 %v1625, %v1626
  %v1628 = vsel %vm1001, %v1556, 0.0
  %v1629 = vadd.f32 %v1627, %v1628
  %v1630 = vsel %vm1001, %v1561, 0.0
  %v1631 = vadd.f32 %v1629, %v1630
  %v1632 = vsel %vm1001, %v1564, 0.0
  %v1633 = vadd.f32 %v1631, %v1632
  %v1634 = vsel %vm1001, %v1569, 0.0
  %v1635 = vadd.f32 %v1633, %v1634
  %v1636 = vsel %vm1001, %v1572, 0.0
  %v1637 = vadd.f32 %v1635, %v1636
  %v1638 = vrot.slane %v1637, 4
  %v1639 = vadd.f32 %v1637, %v1638
  %v1640 = vrot.slane %v1639, 2
  %v1641 = vadd.f32 %v1639, %v1640
  %v1642 = vrot.slane %v1641, 1
  %v1643 = vadd.f32 %v1641, %v1642
  %v1644 = vmul.f32 %v1449, %v1449
  %v1645 = vmul.f32 %v1452, %v1452
  %v1646 = vmul.f32 %v1457, %v1457
  %v1647 = vmul.f32 %v1460, %v1460
  %v1648 = vmul.f32 %v1465, %v1465
  %v1649 = vmul.f32 %v1468, %v1468
  %v1650 = vmul.f32 %v1473, %v1473
  %v1651 = vmul.f32 %v1476, %v1476
  %v1652 = vmul.f32 %v1481, %v1481
  %v1653 = vmul.f32 %v1484, %v1484
  %v1654 = vmul.f32 %v1489, %v1489
  %v1655 = vmul.f32 %v1492, %v1492
  %v1656 = vmul.f32 %v1497, %v1497
  %v1657 = vmul.f32 %v1500, %v1500
  %v1658 = vmul.f32 %v1505, %v1505
  %v1659 = vmul.f32 %v1508, %v1508
  %v1660 = vmul.f32 %v1513, %v1513
  %v1661 = vmul.f32 %v1516, %v1516
  %v1662 = vmul.f32 %v1521, %v1521
  %v1663 = vmul.f32 %v1524, %v1524
  %v1664 = vmul.f32 %v1529, %v1529
  %v1665 = vmul.f32 %v1532, %v1532
  %v1666 = vmul.f32 %v1537, %v1537
  %v1667 = vmul.f32 %v1540, %v1540
  %v1668 = vmul.f32 %v1545, %v1545
  %v1669 = vmul.f32 %v1548, %v1548
  %v1670 = vmul.f32 %v1553, %v1553
  %v1671 = vmul.f32 %v1556, %v1556
  %v1672 = vmul.f32 %v1561, %v1561
  %v1673 = vmul.f32 %v1564, %v1564
  %v1674 = vmul.f32 %v1569, %v1569
  %v1675 = vmul.f32 %v1572, %v1572
  %v1676 = vsel %vm1001, %v1644, 0.0
  %v1677 = vsel %vm1001, %v1645, 0.0
  %v1678 = vadd.f32 %v1676, %v1677
  %v1679 = vsel %vm1001, %v1646, 0.0
  %v1680 = vadd.f32 %v1678, %v1679
  %v1681 = vsel %vm1001, %v1647, 0.0
  %v1682 = vadd.f32 %v1680, %v1681
  %v1683 = vsel %vm1001, %v1648, 0.0
  %v1684 = vadd.f32 %v1682, %v1683
  %v1685 = vsel %vm1001, %v1649, 0.0
  %v1686 = vadd.f32 %v1684, %v1685
  %v1687 = vsel %vm1001, %v1650, 0.0
  %v1688 = vadd.f32 %v1686, %v1687
  %v1689 = vsel %vm1001, %v1651, 0.0
  %v1690 = vadd.f32 %v1688, %v1689
  %v1691 = vsel %vm1001, %v1652, 0.0
  %v1692 = vadd.f32 %v1690, %v1691
  %v1693 = vsel %vm1001, %v1653, 0.0
  %v1694 = vadd.f32 %v1692, %v1693
  %v1695 = vsel %vm1001, %v1654, 0.0
  %v1696 = vadd.f32 %v1694, %v1695
  %v1697 = vsel %vm1001, %v1655, 0.0
  %v1698 = vadd.f32 %v1696, %v1697
  %v1699 = vsel %vm1001, %v1656, 0.0
  %v1700 = vadd.f32 %v1698, %v1699
  %v1701 = vsel %vm1001, %v1657, 0.0
  %v1702 = vadd.f32 %v1700, %v1701
  %v1703 = vsel %vm1001, %v1658, 0.0
  %v1704 = vadd.f32 %v1702, %v1703
  %v1705 = vsel %vm1001, %v1659, 0.0
  %v1706 = vadd.f32 %v1704, %v1705
  %v1707 = vsel %vm1001, %v1660, 0.0
  %v1708 = vadd.f32 %v1706, %v1707
  %v1709 = vsel %vm1001, %v1661, 0.0
  %v1710 = vadd.f32 %v1708, %v1709
  %v1711 = vsel %vm1001, %v1662, 0.0
  %v1712 = vadd.f32 %v1710, %v1711
  %v1713 = vsel %vm1001, %v1663, 0.0
  %v1714 = vadd.f32 %v1712, %v1713
  %v1715 = vsel %vm1001, %v1664, 0.0
  %v1716 = vadd.f32 %v1714, %v1715
  %v1717 = vsel %vm1001, %v1665, 0.0
  %v1718 = vadd.f32 %v1716, %v1717
  %v1719 = vsel %vm1001, %v1666, 0.0
  %v1720 = vadd.f32 %v1718, %v1719
  %v1721 = vsel %vm1001, %v1667, 0.0
  %v1722 = vadd.f32 %v1720, %v1721
  %v1723 = vsel %vm1001, %v1668, 0.0
  %v1724 = vadd.f32 %v1722, %v1723
  %v1725 = vsel %vm1001, %v1669, 0.0
  %v1726 = vadd.f32 %v1724, %v1725
  %v1727 = vsel %vm1001, %v1670, 0.0
  %v1728 = vadd.f32 %v1726, %v1727
  %v1729 = vsel %vm1001, %v1671, 0.0
  %v1730 = vadd.f32 %v1728, %v1729
  %v1731 = vsel %vm1001, %v1672, 0.0
  %v1732 = vadd.f32 %v1730, %v1731
  %v1733 = vsel %vm1001, %v1673, 0.0
  %v1734 = vadd.f32 %v1732, %v1733
  %v1735 = vsel %vm1001, %v1674, 0.0
  %v1736 = vadd.f32 %v1734, %v1735
  %v1737 = vsel %vm1001, %v1675, 0.0
  %v1738 = vadd.f32 %v1736, %v1737
  %v1739 = vrot.slane %v1738, 4
  %v1740 = vadd.f32 %v1738, %v1739
  %v1741 = vrot.slane %v1740, 2
  %v1742 = vadd.f32 %v1740, %v1741
  %v1743 = vrot.slane %v1742, 1
  %v1744 = vadd.f32 %v1742, %v1743
  %v1745 = vld [vmem:[%s2] sm:$0xff]
  %v1746 = vadd.f32 %v1745, %v1643
  %1747 = vst.msk [vmem:[%s2] sm:$0xff] %vm1001, %v1746
  %v1748 = vld [vmem:[%s3] sm:$0xff]
  %v1749 = vadd.f32 %v1748, %v1744
  %1750 = vst.msk [vmem:[%s3] sm:$0xff] %vm1001, %v1749
  // Predicated region
  $region14: #{encoder_block_forward.2} parent=0 // pred_check
    _
  $region15: #{encoder_block_forward.2} parent=0 // pred_check_branch
    %1752 = sbr.rel (0) target = $region17
  $region16: #{encoder_block_forward.2} parent=0 // pred_region
    _
  $region17: #{encoder_block_forward.2} parent=0 // pred_fallthru
    _
  // Predicated region
  $region18: #{encoder_block_forward.2} parent=0 // pred_check
    _
  $region19: #{encoder_block_forward.2} parent=0 // pred_check_branch
    %1754 = sbr.rel (0) target = $region21
  $region20: #{encoder_block_forward.2} parent=0 // pred_region
    _
  $region21: #{encoder_block_forward.2} parent=0 // pred_fallthru
    _
  // Predicated region
  $region22: #{encoder_block_forward.2} parent=0 // pred_check
    _
  $region23: #{encoder_block_forward.2} parent=0 // pred_check_branch
    %1756 = sbr.rel (0) target = $region25
  $region24: #{encoder_block_forward.2} parent=0 // pred_region
    _
  $region25: #{encoder_block_forward.2} parent=0 // pred_fallthru
    _
  // Predicated region
  $region26: #{encoder_block_forward.2} parent=0 // pred_check
    _
  $region27: #{encoder_block_forward.2} parent=0 // pred_check_branch
    %1758 = sbr.rel (0) target = $region29
  $region28: #{encoder_block_forward.2} parent=0 // pred_region
    _
  $region29: #{encoder_block_forward.2} parent=0 // pred_fallthru
    _

// kernel: encoder_block_forward.3
$region0: #{encoder_block_forward.3}
  #allocation0 [shape = 'u32[]', space=smem, size = 0x4, offset = 0x4, fixed_abs, tag = 'smem constant byte address 0x4 - core index']
  #allocation1 [shape = 'u32[144,128]{1,0:T(1,128)}', space=vmem, size = 0x12000, scoped, tag = 'internal scratch']
  %s0 = inlined_call_operand.vmem [shape: bf16[2,18,9,8], index: 0, kind: input, shape index: {}]
  %s1 = inlined_call_operand.vmem [shape: bf16[48,16], index: 1, kind: input, shape index: {}]
  %s2 = inlined_call_operand.vmem [shape: f32[1,16], index: 2, kind: input, shape index: {}]
  %s3 = inlined_call_operand.vmem [shape: f32[1,16], index: 3, kind: input, shape index: {}]
  %s4 = inlined_call_operand.vmem [shape: bf16[2,8,8,8], index: 4, kind: output, shape index: {}]
  %s5 = sld [smem:[#allocation0]]
  $region26: #{encoder_block_forward.3} parent=0
    _
  %s7 = ssub.s32 1, %s5
  %s8 = scalar_select 0, %s7, %s5
  // Predicated region
  $region2: #{encoder_block_forward.3} parent=0 // pred_check
    _
  $region3: #{encoder_block_forward.3} parent=0 // pred_check_branch
    %10 = sbr.rel (0) target = $region5
  $region4: #{encoder_block_forward.3} parent=0 // pred_region
    _
  $region5: #{encoder_block_forward.3} parent=0 // pred_fallthru
    _
  // Predicated region
  $region6: #{encoder_block_forward.3} parent=0 // pred_check
    _
  $region7: #{encoder_block_forward.3} parent=0 // pred_check_branch
    %12 = sbr.rel (0) target = $region9
  $region8: #{encoder_block_forward.3} parent=0 // pred_region
    _
  $region9: #{encoder_block_forward.3} parent=0 // pred_fallthru
    _
  // Predicated region
  $region10: #{encoder_block_forward.3} parent=0 // pred_check
    _
  $region11: #{encoder_block_forward.3} parent=0 // pred_check_branch
    %14 = sbr.rel (0) target = $region13
  $region12: #{encoder_block_forward.3} parent=0 // pred_region
    _
  $region13: #{encoder_block_forward.3} parent=0 // pred_fallthru
    _
  // Predicated region
  $region14: #{encoder_block_forward.3} parent=0 // pred_check
    _
  $region15: #{encoder_block_forward.3} parent=0 // pred_check_branch
    %16 = sbr.rel (0) target = $region17
  $region16: #{encoder_block_forward.3} parent=0 // pred_region
    _
  $region17: #{encoder_block_forward.3} parent=0 // pred_fallthru
    _
  %v18 = vld [vmem:[%s0] sm:$0xf]
  %v19 = vld [vmem:[%s0 + $0x4] sm:$0x1]
  %v20 = vld [vmem:[%s0 + $0x8] sm:$0xf]
  %v21 = vld [vmem:[%s0 + $0xc] sm:$0x1]
  %v22 = vld [vmem:[%s0 + $0x10] sm:$0xf]
  %v23 = vld [vmem:[%s0 + $0x14] sm:$0x1]
  %v24 = vld [vmem:[%s0 + $0x18] sm:$0xf]
  %v25 = vld [vmem:[%s0 + $0x1c] sm:$0x1]
  %v26 = vld [vmem:[%s0 + $0x20] sm:$0xf]
  %v27 = vld [vmem:[%s0 + $0x24] sm:$0x1]
  %v28 = vld [vmem:[%s0 + $0x28] sm:$0xf]
  %v29 = vld [vmem:[%s0 + $0x2c] sm:$0x1]
  %v30 = vld [vmem:[%s0 + $0x30] sm:$0xf]
  %v31 = vld [vmem:[%s0 + $0x34] sm:$0x1]
  %v32 = vld [vmem:[%s0 + $0x38] sm:$0xf]
  %v33 = vld [vmem:[%s0 + $0x3c] sm:$0x1]
  %v34 = vld [vmem:[%s0 + $0x40] sm:$0xf]
  %v35 = vld [vmem:[%s0 + $0x44] sm:$0x1]
  %v36 = vld [vmem:[%s0 + $0x48] sm:$0xf]
  %v37 = vld [vmem:[%s0 + $0x4c] sm:$0x1]
  %v38 = vld [vmem:[%s0 + $0x50] sm:$0xf]
  %v39 = vld [vmem:[%s0 + $0x54] sm:$0x1]
  %v40 = vld [vmem:[%s0 + $0x58] sm:$0xf]
  %v41 = vld [vmem:[%s0 + $0x5c] sm:$0x1]
  %v42 = vld [vmem:[%s0 + $0x60] sm:$0xf]
  %v43 = vld [vmem:[%s0 + $0x64] sm:$0x1]
  %v44 = vld [vmem:[%s0 + $0x68] sm:$0xf]
  %v45 = vld [vmem:[%s0 + $0x6c] sm:$0x1]
  %v46 = vld [vmem:[%s0 + $0x70] sm:$0xf]
  %v47 = vld [vmem:[%s0 + $0x74] sm:$0x1]
  %v48 = vld [vmem:[%s0 + $0x78] sm:$0xf]
  %v49 = vld [vmem:[%s0 + $0x7c] sm:$0x1]
  %v50 = vld [vmem:[%s0 + $0x80] sm:$0xf]
  %v51 = vld [vmem:[%s0 + $0x84] sm:$0x1]
  %v52 = vld [vmem:[%s0 + $0x88] sm:$0xf]
  %v53 = vld [vmem:[%s0 + $0x8c] sm:$0x1]
  %v54 = vld [vmem:[%s0 + $0x90] sm:$0xf]
  %v55 = vld [vmem:[%s0 + $0x94] sm:$0x1]
  %v56 = vld [vmem:[%s0 + $0x98] sm:$0xf]
  %v57 = vld [vmem:[%s0 + $0x9c] sm:$0x1]
  %v58 = vld [vmem:[%s0 + $0xa0] sm:$0xf]
  %v59 = vld [vmem:[%s0 + $0xa4] sm:$0x1]
  %v60 = vld [vmem:[%s0 + $0xa8] sm:$0xf]
  %v61 = vld [vmem:[%s0 + $0xac] sm:$0x1]
  %v62 = vld [vmem:[%s0 + $0xb0] sm:$0xf]
  %v63 = vld [vmem:[%s0 + $0xb4] sm:$0x1]
  %v64 = vld [vmem:[%s0 + $0xb8] sm:$0xf]
  %v65 = vld [vmem:[%s0 + $0xbc] sm:$0x1]
  %v66 = vld [vmem:[%s0 + $0xc0] sm:$0xf]
  %v67 = vld [vmem:[%s0 + $0xc4] sm:$0x1]
  %v68 = vld [vmem:[%s0 + $0xc8] sm:$0xf]
  %v69 = vld [vmem:[%s0 + $0xcc] sm:$0x1]
  %v70 = vld [vmem:[%s0 + $0xd0] sm:$0xf]
  %v71 = vld [vmem:[%s0 + $0xd4] sm:$0x1]
  %v72 = vld [vmem:[%s0 + $0xd8] sm:$0xf]
  %v73 = vld [vmem:[%s0 + $0xdc] sm:$0x1]
  %v74 = vld [vmem:[%s0 + $0xe0] sm:$0xf]
  %v75 = vld [vmem:[%s0 + $0xe4] sm:$0x1]
  %v76 = vld [vmem:[%s0 + $0xe8] sm:$0xf]
  %v77 = vld [vmem:[%s0 + $0xec] sm:$0x1]
  %v78 = vld [vmem:[%s0 + $0xf0] sm:$0xf]
  %v79 = vld [vmem:[%s0 + $0xf4] sm:$0x1]
  %v80 = vld [vmem:[%s0 + $0xf8] sm:$0xf]
  %v81 = vld [vmem:[%s0 + $0xfc] sm:$0x1]
  %v82 = vld [vmem:[%s0 + $0x100] sm:$0xf]
  %v83 = vld [vmem:[%s0 + $0x104] sm:$0x1]
  %v84 = vld [vmem:[%s0 + $0x108] sm:$0xf]
  %v85 = vld [vmem:[%s0 + $0x10c] sm:$0x1]
  %v86 = vld [vmem:[%s0 + $0x110] sm:$0xf]
  %v87 = vld [vmem:[%s0 + $0x114] sm:$0x1]
  %v88 = vld [vmem:[%s0 + $0x118] sm:$0xf]
  %v89 = vld [vmem:[%s0 + $0x11c] sm:$0x1]
  %v154 = vunpack.c.l.b16 %v18
  %v155 = vunpack.c.l.b16 %v19
  %v156 = vunpack.c.l.b16 %v20
  %v157 = vunpack.c.l.b16 %v21
  %v158 = vunpack.c.l.b16 %v22
  %v159 = vunpack.c.l.b16 %v23
  %v160 = vunpack.c.l.b16 %v24
  %v161 = vunpack.c.l.b16 %v25
  %v162 = vunpack.c.l.b16 %v26
  %v163 = vunpack.c.l.b16 %v27
  %v164 = vunpack.c.l.b16 %v28
  %v165 = vunpack.c.l.b16 %v29
  %v166 = vunpack.c.l.b16 %v30
  %v167 = vunpack.c.l.b16 %v31
  %v168 = vunpack.c.l.b16 %v32
  %v169 = vunpack.c.l.b16 %v33
  %v170 = vunpack.c.l.b16 %v34
  %v171 = vunpack.c.l.b16 %v35
  %v172 = vunpack.c.l.b16 %v36
  %v173 = vunpack.c.l.b16 %v37
  %v174 = vunpack.c.l.b16 %v38
  %v175 = vunpack.c.l.b16 %v39
  %v176 = vunpack.c.l.b16 %v40
  %v177 = vunpack.c.l.b16 %v41
  %v178 = vunpack.c.l.b16 %v42
  %v179 = vunpack.c.l.b16 %v43
  %v180 = vunpack.c.l.b16 %v44
  %v181 = vunpack.c.l.b16 %v45
  %v182 = vunpack.c.l.b16 %v46
  %v183 = vunpack.c.l.b16 %v47
  %v184 = vunpack.c.l.b16 %v48
  %v185 = vunpack.c.l.b16 %v49
  %v186 = vunpack.c.l.b16 %v54
  %v187 = vunpack.c.l.b16 %v55
  %v188 = vunpack.c.l.b16 %v56
  %v189 = vunpack.c.l.b16 %v57
  %v190 = vunpack.c.l.b16 %v58
  %v191 = vunpack.c.l.b16 %v59
  %v192 = vunpack.c.l.b16 %v60
  %v193 = vunpack.c.l.b16 %v61
  %v194 = vunpack.c.l.b16 %v62
  %v195 = vunpack.c.l.b16 %v63
  %v196 = vunpack.c.l.b16 %v64
  %v197 = vunpack.c.l.b16 %v65
  %v198 = vunpack.c.l.b16 %v66
  %v199 = vunpack.c.l.b16 %v67
  %v200 = vunpack.c.l.b16 %v68
  %v201 = vunpack.c.l.b16 %v69
  %v202 = vunpack.c.l.b16 %v70
  %v203 = vunpack.c.l.b16 %v71
  %v204 = vunpack.c.l.b16 %v72
  %v205 = vunpack.c.l.b16 %v73
  %v206 = vunpack.c.l.b16 %v74
  %v207 = vunpack.c.l.b16 %v75
  %v208 = vunpack.c.l.b16 %v76
  %v209 = vunpack.c.l.b16 %v77
  %v210 = vunpack.c.l.b16 %v78
  %v211 = vunpack.c.l.b16 %v79
  %v212 = vunpack.c.l.b16 %v80
  %v213 = vunpack.c.l.b16 %v81
  %v214 = vunpack.c.l.b16 %v82
  %v215 = vunpack.c.l.b16 %v83
  %v216 = vunpack.c.l.b16 %v84
  %v217 = vunpack.c.l.b16 %v85
  %v218 = vpack.c.b16 %v155, %v154
  %v219 = vpack.c.b16 %v157, %v156
  %v220 = vpack.c.b16 %v159, %v158
  %v221 = vpack.c.b16 %v161, %v160
  %v222 = vpack.c.b16 %v163, %v162
  %v223 = vpack.c.b16 %v165, %v164
  %v224 = vpack.c.b16 %v167, %v166
  %v225 = vpack.c.b16 %v169, %v168
  %v226 = vpack.c.b16 %v171, %v170
  %v227 = vpack.c.b16 %v173, %v172
  %v228 = vpack.c.b16 %v175, %v174
  %v229 = vpack.c.b16 %v177, %v176
  %v230 = vpack.c.b16 %v179, %v178
  %v231 = vpack.c.b16 %v181, %v180
  %v232 = vpack.c.b16 %v183, %v182
  %v233 = vpack.c.b16 %v185, %v184
  %v234 = vpack.c.b16 %v187, %v186
  %v235 = vpack.c.b16 %v189, %v188
  %v236 = vpack.c.b16 %v191, %v190
  %v237 = vpack.c.b16 %v193, %v192
  %v238 = vpack.c.b16 %v195, %v194
  %v239 = vpack.c.b16 %v197, %v196
  %v240 = vpack.c.b16 %v199, %v198
  %v241 = vpack.c.b16 %v201, %v200
  %v242 = vpack.c.b16 %v203, %v202
  %v243 = vpack.c.b16 %v205, %v204
  %v244 = vpack.c.b16 %v207, %v206
  %v245 = vpack.c.b16 %v209, %v208
  %v246 = vpack.c.b16 %v211, %v210
  %v247 = vpack.c.b16 %v213, %v212
  %v248 = vpack.c.b16 %v215, %v214
  %v249 = vpack.c.b16 %v217, %v216
  %v251 = vshrl.u32 %v218, 16
  %v253 = vshll.u32 %v218, 16
  %v255 = vrot.slane %v253, 1
  %v256 = vor.u32 %v251, %v255
  %v258 = vshrl.u32 %v219, 16
  %v260 = vshll.u32 %v219, 16
  %v262 = vrot.slane %v260, 1
  %v263 = vor.u32 %v258, %v262
  %v265 = vshrl.u32 %v220, 16
  %v267 = vshll.u32 %v220, 16
  %v269 = vrot.slane %v267, 1
  %v270 = vor.u32 %v265, %v269
  %v272 = vshrl.u32 %v221, 16
  %v274 = vshll.u32 %v221, 16
  %v276 = vrot.slane %v274, 1
  %v277 = vor.u32 %v272, %v276
  %v279 = vshrl.u32 %v222, 16
  %v281 = vshll.u32 %v222, 16
  %v283 = vrot.slane %v281, 1
  %v284 = vor.u32 %v279, %v283
  %v286 = vshrl.u32 %v223, 16
  %v288 = vshll.u32 %v223, 16
  %v290 = vrot.slane %v288, 1
  %v291 = vor.u32 %v286, %v290
  %v293 = vshrl.u32 %v224, 16
  %v295 = vshll.u32 %v224, 16
  %v297 = vrot.slane %v295, 1
  %v298 = vor.u32 %v293, %v297
  %v300 = vshrl.u32 %v225, 16
  %v302 = vshll.u32 %v225, 16
  %v304 = vrot.slane %v302, 1
  %v305 = vor.u32 %v300, %v304
  %v307 = vshrl.u32 %v226, 16
  %v309 = vshll.u32 %v226, 16
  %v311 = vrot.slane %v309, 1
  %v312 = vor.u32 %v307, %v311
  %v314 = vshrl.u32 %v227, 16
  %v316 = vshll.u32 %v227, 16
  %v318 = vrot.slane %v316, 1
  %v319 = vor.u32 %v314, %v318
  %v321 = vshrl.u32 %v228, 16
  %v323 = vshll.u32 %v228, 16
  %v325 = vrot.slane %v323, 1
  %v326 = vor.u32 %v321, %v325
  %v328 = vshrl.u32 %v229, 16
  %v330 = vshll.u32 %v229, 16
  %v332 = vrot.slane %v330, 1
  %v333 = vor.u32 %v328, %v332
  %v335 = vshrl.u32 %v230, 16
  %v337 = vshll.u32 %v230, 16
  %v339 = vrot.slane %v337, 1
  %v340 = vor.u32 %v335, %v339
  %v342 = vshrl.u32 %v231, 16
  %v344 = vshll.u32 %v231, 16
  %v346 = vrot.slane %v344, 1
  %v347 = vor.u32 %v342, %v346
  %v349 = vshrl.u32 %v232, 16
  %v351 = vshll.u32 %v232, 16
  %v353 = vrot.slane %v351, 1
  %v354 = vor.u32 %v349, %v353
  %v356 = vshrl.u32 %v233, 16
  %v358 = vshll.u32 %v233, 16
  %v360 = vrot.slane %v358, 1
  %v361 = vor.u32 %v356, %v360
  %v363 = vshrl.u32 %v234, 16
  %v365 = vshll.u32 %v234, 16
  %v367 = vrot.slane %v365, 1
  %v368 = vor.u32 %v363, %v367
  %v370 = vshrl.u32 %v235, 16
  %v372 = vshll.u32 %v235, 16
  %v374 = vrot.slane %v372, 1
  %v375 = vor.u32 %v370, %v374
  %v377 = vshrl.u32 %v236, 16
  %v379 = vshll.u32 %v236, 16
  %v381 = vrot.slane %v379, 1
  %v382 = vor.u32 %v377, %v381
  %v384 = vshrl.u32 %v237, 16
  %v386 = vshll.u32 %v237, 16
  %v388 = vrot.slane %v386, 1
  %v389 = vor.u32 %v384, %v388
  %v391 = vshrl.u32 %v238, 16
  %v393 = vshll.u32 %v238, 16
  %v395 = vrot.slane %v393, 1
  %v396 = vor.u32 %v391, %v395
  %v398 = vshrl.u32 %v239, 16
  %v400 = vshll.u32 %v239, 16
  %v402 = vrot.slane %v400, 1
  %v403 = vor.u32 %v398, %v402
  %v405 = vshrl.u32 %v240, 16
  %v407 = vshll.u32 %v240, 16
  %v409 = vrot.slane %v407, 1
  %v410 = vor.u32 %v405, %v409
  %v412 = vshrl.u32 %v241, 16
  %v414 = vshll.u32 %v241, 16
  %v416 = vrot.slane %v414, 1
  %v417 = vor.u32 %v412, %v416
  %v419 = vshrl.u32 %v242, 16
  %v421 = vshll.u32 %v242, 16
  %v423 = vrot.slane %v421, 1
  %v424 = vor.u32 %v419, %v423
  %v426 = vshrl.u32 %v243, 16
  %v428 = vshll.u32 %v243, 16
  %v430 = vrot.slane %v428, 1
  %v431 = vor.u32 %v426, %v430
  %v433 = vshrl.u32 %v244, 16
  %v435 = vshll.u32 %v244, 16
  %v437 = vrot.slane %v435, 1
  %v438 = vor.u32 %v433, %v437
  %v440 = vshrl.u32 %v245, 16
  %v442 = vshll.u32 %v245, 16
  %v444 = vrot.slane %v442, 1
  %v445 = vor.u32 %v440, %v444
  %v447 = vshrl.u32 %v246, 16
  %v449 = vshll.u32 %v246, 16
  %v451 = vrot.slane %v449, 1
  %v452 = vor.u32 %v447, %v451
  %v454 = vshrl.u32 %v247, 16
  %v456 = vshll.u32 %v247, 16
  %v458 = vrot.slane %v456, 1
  %v459 = vor.u32 %v454, %v458
  %v461 = vshrl.u32 %v248, 16
  %v463 = vshll.u32 %v248, 16
  %v465 = vrot.slane %v463, 1
  %v466 = vor.u32 %v461, %v465
  %v468 = vshrl.u32 %v249, 16
  %v470 = vshll.u32 %v249, 16
  %v472 = vrot.slane %v470, 1
  %v473 = vor.u32 %v468, %v472
  %474 = vrot.lane.b32.xlu0 %v256, 8
  %v475 = vpop.permute.xlu0 %474
  %476 = vrot.lane.b32.xlu0 %v263, 8
  %v477 = vpop.permute.xlu0 %476
  %478 = vrot.lane.b32.xlu0 %v270, 8
  %v479 = vpop.permute.xlu0 %478
  %480 = vrot.lane.b32.xlu0 %v277, 8
  %v481 = vpop.permute.xlu0 %480
  %482 = vrot.lane.b32.xlu0 %v284, 8
  %v483 = vpop.permute.xlu0 %482
  %484 = vrot.lane.b32.xlu0 %v291, 8
  %v485 = vpop.permute.xlu0 %484
  %486 = vrot.lane.b32.xlu0 %v298, 8
  %v487 = vpop.permute.xlu0 %486
  %488 = vrot.lane.b32.xlu0 %v305, 8
  %v489 = vpop.permute.xlu0 %488
  %490 = vrot.lane.b32.xlu0 %v312, 8
  %v491 = vpop.permute.xlu0 %490
  %492 = vrot.lane.b32.xlu0 %v319, 8
  %v493 = vpop.permute.xlu0 %492
  %494 = vrot.lane.b32.xlu0 %v326, 8
  %v495 = vpop.permute.xlu0 %494
  %496 = vrot.lane.b32.xlu0 %v333, 8
  %v497 = vpop.permute.xlu0 %496
  %498 = vrot.lane.b32.xlu0 %v340, 8
  %v499 = vpop.permute.xlu0 %498
  %500 = vrot.lane.b32.xlu0 %v347, 8
  %v501 = vpop.permute.xlu0 %500
  %502 = vrot.lane.b32.xlu0 %v354, 8
  %v503 = vpop.permute.xlu0 %502
  %504 = vrot.lane.b32.xlu0 %v361, 8
  %v505 = vpop.permute.xlu0 %504
  %506 = vrot.lane.b32.xlu0 %v368, 8
  %v507 = vpop.permute.xlu0 %506
  %508 = vrot.lane.b32.xlu0 %v375, 8
  %v509 = vpop.permute.xlu0 %508
  %510 = vrot.lane.b32.xlu0 %v382, 8
  %v511 = vpop.permute.xlu0 %510
  %512 = vrot.lane.b32.xlu0 %v389, 8
  %v513 = vpop.permute.xlu0 %512
  %514 = vrot.lane.b32.xlu0 %v396, 8
  %v515 = vpop.permute.xlu0 %514
  %516 = vrot.lane.b32.xlu0 %v403, 8
  %v517 = vpop.permute.xlu0 %516
  %518 = vrot.lane.b32.xlu0 %v410, 8
  %v519 = vpop.permute.xlu0 %518
  %520 = vrot.lane.b32.xlu0 %v417, 8
  %v521 = vpop.permute.xlu0 %520
  %522 = vrot.lane.b32.xlu0 %v424, 8
  %v523 = vpop.permute.xlu0 %522
  %524 = vrot.lane.b32.xlu0 %v431, 8
  %v525 = vpop.permute.xlu0 %524
  %526 = vrot.lane.b32.xlu0 %v438, 8
  %v527 = vpop.permute.xlu0 %526
  %528 = vrot.lane.b32.xlu0 %v445, 8
  %v529 = vpop.permute.xlu0 %528
  %530 = vrot.lane.b32.xlu0 %v452, 8
  %v531 = vpop.permute.xlu0 %530
  %532 = vrot.lane.b32.xlu0 %v459, 8
  %v533 = vpop.permute.xlu0 %532
  %534 = vrot.lane.b32.xlu0 %v466, 8
  %v535 = vpop.permute.xlu0 %534
  %536 = vrot.lane.b32.xlu0 %v473, 8
  %v537 = vpop.permute.xlu0 %536
  %v540 = vunpack.c.l.b16 %v50
  %v541 = vunpack.c.l.b16 %v86
  %v542 = vpack.c.b16 %v156, %v156
  %v543 = vpack.c.b16 %v158, %v158
  %v544 = vpack.c.b16 %v160, %v160
  %v545 = vpack.c.b16 %v162, %v162
  %v546 = vpack.c.b16 %v164, %v164
  %v547 = vpack.c.b16 %v166, %v166
  %v548 = vpack.c.b16 %v168, %v168
  %v549 = vpack.c.b16 %v170, %v170
  %v550 = vpack.c.b16 %v172, %v172
  %v551 = vpack.c.b16 %v174, %v174
  %v552 = vpack.c.b16 %v176, %v176
  %v553 = vpack.c.b16 %v178, %v178
  %v554 = vpack.c.b16 %v180, %v180
  %v555 = vpack.c.b16 %v182, %v182
  %v556 = vpack.c.b16 %v184, %v184
  %v557 = vpack.c.b16 %v540, %v540
  %v558 = vpack.c.b16 %v188, %v188
  %v559 = vpack.c.b16 %v190, %v190
  %v560 = vpack.c.b16 %v192, %v192
  %v561 = vpack.c.b16 %v194, %v194
  %v562 = vpack.c.b16 %v196, %v196
  %v563 = vpack.c.b16 %v198, %v198
  %v564 = vpack.c.b16 %v200, %v200
  %v565 = vpack.c.b16 %v202, %v202
  %v566 = vpack.c.b16 %v204, %v204
  %v567 = vpack.c.b16 %v206, %v206
  %v568 = vpack.c.b16 %v208, %v208
  %v569 = vpack.c.b16 %v210, %v210
  %v570 = vpack.c.b16 %v212, %v212
  %v571 = vpack.c.b16 %v214, %v214
  %v572 = vpack.c.b16 %v216, %v216
  %v573 = vpack.c.b16 %v541, %v541
  %574 = vrot.lane.b32.xlu0 %v542, 16
  %v575 = vpop.permute.xlu0 %574
  %576 = vrot.lane.b32.xlu0 %v543, 16
  %v577 = vpop.permute.xlu0 %576
  %578 = vrot.lane.b32.xlu0 %v544, 16
  %v579 = vpop.permute.xlu0 %578
  %580 = vrot.lane.b32.xlu0 %v545, 16
  %v581 = vpop.permute.xlu0 %580
  %582 = vrot.lane.b32.xlu0 %v546, 16
  %v583 = vpop.permute.xlu0 %582
  %584 = vrot.lane.b32.xlu0 %v547, 16
  %v585 = vpop.permute.xlu0 %584
  %586 = vrot.lane.b32.xlu0 %v548, 16
  %v587 = vpop.permute.xlu0 %586
  %588 = vrot.lane.b32.xlu0 %v549, 16
  %v589 = vpop.permute.xlu0 %588
  %590 = vrot.lane.b32.xlu0 %v550, 16
  %v591 = vpop.permute.xlu0 %590
  %592 = vrot.lane.b32.xlu0 %v551, 16
  %v593 = vpop.permute.xlu0 %592
  %594 = vrot.lane.b32.xlu0 %v552, 16
  %v595 = vpop.permute.xlu0 %594
  %596 = vrot.lane.b32.xlu0 %v553, 16
  %v597 = vpop.permute.xlu0 %596
  %598 = vrot.lane.b32.xlu0 %v554, 16
  %v599 = vpop.permute.xlu0 %598
  %600 = vrot.lane.b32.xlu0 %v555, 16
  %v601 = vpop.permute.xlu0 %600
  %602 = vrot.lane.b32.xlu0 %v556, 16
  %v603 = vpop.permute.xlu0 %602
  %604 = vrot.lane.b32.xlu0 %v557, 16
  %v605 = vpop.permute.xlu0 %604
  %606 = vrot.lane.b32.xlu0 %v558, 16
  %v607 = vpop.permute.xlu0 %606
  %608 = vrot.lane.b32.xlu0 %v559, 16
  %v609 = vpop.permute.xlu0 %608
  %610 = vrot.lane.b32.xlu0 %v560, 16
  %v611 = vpop.permute.xlu0 %610
  %612 = vrot.lane.b32.xlu0 %v561, 16
  %v613 = vpop.permute.xlu0 %612
  %614 = vrot.lane.b32.xlu0 %v562, 16
  %v615 = vpop.permute.xlu0 %614
  %616 = vrot.lane.b32.xlu0 %v563, 16
  %v617 = vpop.permute.xlu0 %616
  %618 = vrot.lane.b32.xlu0 %v564, 16
  %v619 = vpop.permute.xlu0 %618
  %620 = vrot.lane.b32.xlu0 %v565, 16
  %v621 = vpop.permute.xlu0 %620
  %622 = vrot.lane.b32.xlu0 %v566, 16
  %v623 = vpop.permute.xlu0 %622
  %624 = vrot.lane.b32.xlu0 %v567, 16
  %v625 = vpop.permute.xlu0 %624
  %626 = vrot.lane.b32.xlu0 %v568, 16
  %v627 = vpop.permute.xlu0 %626
  %628 = vrot.lane.b32.xlu0 %v569, 16
  %v629 = vpop.permute.xlu0 %628
  %630 = vrot.lane.b32.xlu0 %v570, 16
  %v631 = vpop.permute.xlu0 %630
  %632 = vrot.lane.b32.xlu0 %v571, 16
  %v633 = vpop.permute.xlu0 %632
  %634 = vrot.lane.b32.xlu0 %v572, 16
  %v635 = vpop.permute.xlu0 %634
  %636 = vrot.lane.b32.xlu0 %v573, 16
  %v637 = vpop.permute.xlu0 %636
  %v640 = vunpack.c.l.b16 %v51
  %v641 = vunpack.c.l.b16 %v87
  %v642 = vpack.c.b16 %v640, %v540
  %v643 = vpack.c.b16 %v641, %v541
  %v645 = vshrl.u32 %v642, 16
  %v647 = vshll.u32 %v642, 16
  %v649 = vrot.slane %v647, 1
  %v650 = vor.u32 %v645, %v649
  %v652 = vshrl.u32 %v643, 16
  %v654 = vshll.u32 %v643, 16
  %v656 = vrot.slane %v654, 1
  %v657 = vor.u32 %v652, %v656
  %658 = vrot.lane.b32.xlu0 %v263, 24
  %v659 = vpop.permute.xlu0 %658
  %660 = vrot.lane.b32.xlu0 %v270, 24
  %v661 = vpop.permute.xlu0 %660
  %662 = vrot.lane.b32.xlu0 %v277, 24
  %v663 = vpop.permute.xlu0 %662
  %664 = vrot.lane.b32.xlu0 %v284, 24
  %v665 = vpop.permute.xlu0 %664
  %666 = vrot.lane.b32.xlu0 %v291, 24
  %v667 = vpop.permute.xlu0 %666
  %668 = vrot.lane.b32.xlu0 %v298, 24
  %v669 = vpop.permute.xlu0 %668
  %670 = vrot.lane.b32.xlu0 %v305, 24
  %v671 = vpop.permute.xlu0 %670
  %672 = vrot.lane.b32.xlu0 %v312, 24
  %v673 = vpop.permute.xlu0 %672
  %674 = vrot.lane.b32.xlu0 %v319, 24
  %v675 = vpop.permute.xlu0 %674
  %676 = vrot.lane.b32.xlu0 %v326, 24
  %v677 = vpop.permute.xlu0 %676
  %678 = vrot.lane.b32.xlu0 %v333, 24
  %v679 = vpop.permute.xlu0 %678
  %680 = vrot.lane.b32.xlu0 %v340, 24
  %v681 = vpop.permute.xlu0 %680
  %682 = vrot.lane.b32.xlu0 %v347, 24
  %v683 = vpop.permute.xlu0 %682
  %684 = vrot.lane.b32.xlu0 %v354, 24
  %v685 = vpop.permute.xlu0 %684
  %686 = vrot.lane.b32.xlu0 %v361, 24
  %v687 = vpop.permute.xlu0 %686
  %688 = vrot.lane.b32.xlu0 %v650, 24
  %v689 = vpop.permute.xlu0 %688
  %690 = vrot.lane.b32.xlu0 %v375, 24
  %v691 = vpop.permute.xlu0 %690
  %692 = vrot.lane.b32.xlu0 %v382, 24
  %v693 = vpop.permute.xlu0 %692
  %694 = vrot.lane.b32.xlu0 %v389, 24
  %v695 = vpop.permute.xlu0 %694
  %696 = vrot.lane.b32.xlu0 %v396, 24
  %v697 = vpop.permute.xlu0 %696
  %698 = vrot.lane.b32.xlu0 %v403, 24
  %v699 = vpop.permute.xlu0 %698
  %700 = vrot.lane.b32.xlu0 %v410, 24
  %v701 = vpop.permute.xlu0 %700
  %702 = vrot.lane.b32.xlu0 %v417, 24
  %v703 = vpop.permute.xlu0 %702
  %704 = vrot.lane.b32.xlu0 %v424, 24
  %v705 = vpop.permute.xlu0 %704
  %706 = vrot.lane.b32.xlu0 %v431, 24
  %v707 = vpop.permute.xlu0 %706
  %708 = vrot.lane.b32.xlu0 %v438, 24
  %v709 = vpop.permute.xlu0 %708
  %710 = vrot.lane.b32.xlu0 %v445, 24
  %v711 = vpop.permute.xlu0 %710
  %712 = vrot.lane.b32.xlu0 %v452, 24
  %v713 = vpop.permute.xlu0 %712
  %714 = vrot.lane.b32.xlu0 %v459, 24
  %v715 = vpop.permute.xlu0 %714
  %716 = vrot.lane.b32.xlu0 %v466, 24
  %v717 = vpop.permute.xlu0 %716
  %718 = vrot.lane.b32.xlu0 %v473, 24
  %v719 = vpop.permute.xlu0 %718
  %720 = vrot.lane.b32.xlu0 %v657, 24
  %v721 = vpop.permute.xlu0 %720
  %v724 = vunpack.c.l.b16 %v52
  %v725 = vunpack.c.l.b16 %v88
  %v726 = vpack.c.b16 %v724, %v724
  %v727 = vpack.c.b16 %v725, %v725
  %728 = vrot.lane.b32.xlu0 %v543, 32
  %v729 = vpop.permute.xlu0 %728
  %730 = vrot.lane.b32.xlu0 %v544, 32
  %v731 = vpop.permute.xlu0 %730
  %732 = vrot.lane.b32.xlu0 %v545, 32
  %v733 = vpop.permute.xlu0 %732
  %734 = vrot.lane.b32.xlu0 %v546, 32
  %v735 = vpop.permute.xlu0 %734
  %736 = vrot.lane.b32.xlu0 %v547, 32
  %v737 = vpop.permute.xlu0 %736
  %738 = vrot.lane.b32.xlu0 %v548, 32
  %v739 = vpop.permute.xlu0 %738
  %740 = vrot.lane.b32.xlu0 %v549, 32
  %v741 = vpop.permute.xlu0 %740
  %742 = vrot.lane.b32.xlu0 %v550, 32
  %v743 = vpop.permute.xlu0 %742
  %744 = vrot.lane.b32.xlu0 %v551, 32
  %v745 = vpop.permute.xlu0 %744
  %746 = vrot.lane.b32.xlu0 %v552, 32
  %v747 = vpop.permute.xlu0 %746
  %748 = vrot.lane.b32.xlu0 %v553, 32
  %v749 = vpop.permute.xlu0 %748
  %750 = vrot.lane.b32.xlu0 %v554, 32
  %v751 = vpop.permute.xlu0 %750
  %752 = vrot.lane.b32.xlu0 %v555, 32
  %v753 = vpop.permute.xlu0 %752
  %754 = vrot.lane.b32.xlu0 %v556, 32
  %v755 = vpop.permute.xlu0 %754
  %756 = vrot.lane.b32.xlu0 %v557, 32
  %v757 = vpop.permute.xlu0 %756
  %758 = vrot.lane.b32.xlu0 %v726, 32
  %v759 = vpop.permute.xlu0 %758
  %760 = vrot.lane.b32.xlu0 %v559, 32
  %v761 = vpop.permute.xlu0 %760
  %762 = vrot.lane.b32.xlu0 %v560, 32
  %v763 = vpop.permute.xlu0 %762
  %764 = vrot.lane.b32.xlu0 %v561, 32
  %v765 = vpop.permute.xlu0 %764
  %766 = vrot.lane.b32.xlu0 %v562, 32
  %v767 = vpop.permute.xlu0 %766
  %768 = vrot.lane.b32.xlu0 %v563, 32
  %v769 = vpop.permute.xlu0 %768
  %770 = vrot.lane.b32.xlu0 %v564, 32
  %v771 = vpop.permute.xlu0 %770
  %772 = vrot.lane.b32.xlu0 %v565, 32
  %v773 = vpop.permute.xlu0 %772
  %774 = vrot.lane.b32.xlu0 %v566, 32
  %v775 = vpop.permute.xlu0 %774
  %776 = vrot.lane.b32.xlu0 %v567, 32
  %v777 = vpop.permute.xlu0 %776
  %778 = vrot.lane.b32.xlu0 %v568, 32
  %v779 = vpop.permute.xlu0 %778
  %780 = vrot.lane.b32.xlu0 %v569, 32
  %v781 = vpop.permute.xlu0 %780
  %782 = vrot.lane.b32.xlu0 %v570, 32
  %v783 = vpop.permute.xlu0 %782
  %784 = vrot.lane.b32.xlu0 %v571, 32
  %v785 = vpop.permute.xlu0 %784
  %786 = vrot.lane.b32.xlu0 %v572, 32
  %v787 = vpop.permute.xlu0 %786
  %788 = vrot.lane.b32.xlu0 %v573, 32
  %v789 = vpop.permute.xlu0 %788
  %790 = vrot.lane.b32.xlu0 %v727, 32
  %v791 = vpop.permute.xlu0 %790
  %v794 = vunpack.c.l.b16 %v53
  %v795 = vunpack.c.l.b16 %v89
  %v796 = vpack.c.b16 %v794, %v724
  %v797 = vpack.c.b16 %v795, %v725
  %v799 = vshrl.u32 %v796, 16
  %v801 = vshll.u32 %v796, 16
  %v803 = vrot.slane %v801, 1
  %v804 = vor.u32 %v799, %v803
  %v806 = vshrl.u32 %v797, 16
  %v808 = vshll.u32 %v797, 16
  %v810 = vrot.slane %v808, 1
  %v811 = vor.u32 %v806, %v810
  %812 = vrot.lane.b32.xlu0 %v270, 40
  %v813 = vpop.permute.xlu0 %812
  %814 = vrot.lane.b32.xlu0 %v277, 40
  %v815 = vpop.permute.xlu0 %814
  %816 = vrot.lane.b32.xlu0 %v284, 40
  %v817 = vpop.permute.xlu0 %816
  %818 = vrot.lane.b32.xlu0 %v291, 40
  %v819 = vpop.permute.xlu0 %818
  %820 = vrot.lane.b32.xlu0 %v298, 40
  %v821 = vpop.permute.xlu0 %820
  %822 = vrot.lane.b32.xlu0 %v305, 40
  %v823 = vpop.permute.xlu0 %822
  %824 = vrot.lane.b32.xlu0 %v312, 40
  %v825 = vpop.permute.xlu0 %824
  %826 = vrot.lane.b32.xlu0 %v319, 40
  %v827 = vpop.permute.xlu0 %826
  %828 = vrot.lane.b32.xlu0 %v326, 40
  %v829 = vpop.permute.xlu0 %828
  %830 = vrot.lane.b32.xlu0 %v333, 40
  %v831 = vpop.permute.xlu0 %830
  %832 = vrot.lane.b32.xlu0 %v340, 40
  %v833 = vpop.permute.xlu0 %832
  %834 = vrot.lane.b32.xlu0 %v347, 40
  %v835 = vpop.permute.xlu0 %834
  %836 = vrot.lane.b32.xlu0 %v354, 40
  %v837 = vpop.permute.xlu0 %836
  %838 = vrot.lane.b32.xlu0 %v361, 40
  %v839 = vpop.permute.xlu0 %838
  %840 = vrot.lane.b32.xlu0 %v650, 40
  %v841 = vpop.permute.xlu0 %840
  %842 = vrot.lane.b32.xlu0 %v804, 40
  %v843 = vpop.permute.xlu0 %842
  %844 = vrot.lane.b32.xlu0 %v382, 40
  %v845 = vpop.permute.xlu0 %844
  %846 = vrot.lane.b32.xlu0 %v389, 40
  %v847 = vpop.permute.xlu0 %846
  %848 = vrot.lane.b32.xlu0 %v396, 40
  %v849 = vpop.permute.xlu0 %848
  %850 = vrot.lane.b32.xlu0 %v403, 40
  %v851 = vpop.permute.xlu0 %850
  %852 = vrot.lane.b32.xlu0 %v410, 40
  %v853 = vpop.permute.xlu0 %852
  %854 = vrot.lane.b32.xlu0 %v417, 40
  %v855 = vpop.permute.xlu0 %854
  %856 = vrot.lane.b32.xlu0 %v424, 40
  %v857 = vpop.permute.xlu0 %856
  %858 = vrot.lane.b32.xlu0 %v431, 40
  %v859 = vpop.permute.xlu0 %858
  %860 = vrot.lane.b32.xlu0 %v438, 40
  %v861 = vpop.permute.xlu0 %860
  %862 = vrot.lane.b32.xlu0 %v445, 40
  %v863 = vpop.permute.xlu0 %862
  %864 = vrot.lane.b32.xlu0 %v452, 40
  %v865 = vpop.permute.xlu0 %864
  %866 = vrot.lane.b32.xlu0 %v459, 40
  %v867 = vpop.permute.xlu0 %866
  %868 = vrot.lane.b32.xlu0 %v466, 40
  %v869 = vpop.permute.xlu0 %868
  %870 = vrot.lane.b32.xlu0 %v473, 40
  %v871 = vpop.permute.xlu0 %870
  %872 = vrot.lane.b32.xlu0 %v657, 40
  %v873 = vpop.permute.xlu0 %872
  %874 = vrot.lane.b32.xlu0 %v811, 40
  %v875 = vpop.permute.xlu0 %874
  %vm876 = vcmask 64512
  %v879 = vsel %vm876, %v18, %v475
  %v882 = vsel %vm876, %v20, %v477
  %v885 = vsel %vm876, %v22, %v479
  %v888 = vsel %vm876, %v24, %v481
  %v891 = vsel %vm876, %v26, %v483
  %v894 = vsel %vm876, %v28, %v485
  %v897 = vsel %vm876, %v30, %v487
  %v900 = vsel %vm876, %v32, %v489
  %v903 = vsel %vm876, %v34, %v491
  %v906 = vsel %vm876, %v36, %v493
  %v909 = vsel %vm876, %v38, %v495
  %v912 = vsel %vm876, %v40, %v497
  %v915 = vsel %vm876, %v42, %v499
  %v918 = vsel %vm876, %v44, %v501
  %v921 = vsel %vm876, %v46, %v503
  %v924 = vsel %vm876, %v48, %v505
  %v927 = vsel %vm876, %v54, %v507
  %v930 = vsel %vm876, %v56, %v509
  %v933 = vsel %vm876, %v58, %v511
  %v936 = vsel %vm876, %v60, %v513
  %v939 = vsel %vm876, %v62, %v515
  %v942 = vsel %vm876, %v64, %v517
  %v945 = vsel %vm876, %v66, %v519
  %v948 = vsel %vm876, %v68, %v521
  %v951 = vsel %vm876, %v70, %v523
  %v954 = vsel %vm876, %v72, %v525
  %v957 = vsel %vm876, %v74, %v527
  %v960 = vsel %vm876, %v76, %v529
  %v963 = vsel %vm876, %v78, %v531
  %v966 = vsel %vm876, %v80, %v533
  %v969 = vsel %vm876, %v82, %v535
  %v972 = vsel %vm876, %v84, %v537
  %vm973 = vcmask 130048
  %v975 = vsel %vm973, %v879, %v575
  %v977 = vsel %vm973, %v882, %v577
  %v979 = vsel %vm973, %v885, %v579
  %v981 = vsel %vm973, %v888, %v581
  %v983 = vsel %vm973, %v891, %v583
  %v985 = vsel %vm973, %v894, %v585
  %v987 = vsel %vm973, %v897, %v587
  %v989 = vsel %vm973, %v900, %v589
  %v991 = vsel %vm973, %v903, %v591
  %v993 = vsel %vm973, %v906, %v593
  %v995 = vsel %vm973, %v909, %v595
  %v997 = vsel %vm973, %v912, %v597
  %v999 = vsel %vm973, %v915, %v599
  %v1001 = vsel %vm973, %v918, %v601
  %v1003 = vsel %vm973, %v921, %v603
  %v1005 = vsel %vm973, %v924, %v605
  %v1007 = vsel %vm973, %v927, %v607
  %v1009 = vsel %vm973, %v930, %v609
  %v1011 = vsel %vm973, %v933, %v611
  %v1013 = vsel %vm973, %v936, %v613
  %v1015 = vsel %vm973, %v939, %v615
  %v1017 = vsel %vm973, %v942, %v617
  %v1019 = vsel %vm973, %v945, %v619
  %v1021 = vsel %vm973, %v948, %v621
  %v1023 = vsel %vm973, %v951, %v623
  %v1025 = vsel %vm973, %v954, %v625
  %v1027 = vsel %vm973, %v957, %v627
  %v1029 = vsel %vm973, %v960, %v629
  %v1031 = vsel %vm973, %v963, %v631
  %v1033 = vsel %vm973, %v966, %v633
  %v1035 = vsel %vm973, %v969, %v635
  %v1037 = vsel %vm973, %v972, %v637
  %vm1038 = vcmask 195584
  %v1040 = vsel %vm1038, %v975, %v659
  %v1042 = vsel %vm1038, %v977, %v661
  %v1044 = vsel %vm1038, %v979, %v663
  %v1046 = vsel %vm1038, %v981, %v665
  %v1048 = vsel %vm1038, %v983, %v667
  %v1050 = vsel %vm1038, %v985, %v669
  %v1052 = vsel %vm1038, %v987, %v671
  %v1054 = vsel %vm1038, %v989, %v673
  %v1056 = vsel %vm1038, %v991, %v675
  %v1058 = vsel %vm1038, %v993, %v677
  %v1060 = vsel %vm1038, %v995, %v679
  %v1062 = vsel %vm1038, %v997, %v681
  %v1064 = vsel %vm1038, %v999, %v683
  %v1066 = vsel %vm1038, %v1001, %v685
  %v1068 = vsel %vm1038, %v1003, %v687
  %v1070 = vsel %vm1038, %v1005, %v689
  %v1072 = vsel %vm1038, %v1007, %v691
  %v1074 = vsel %vm1038, %v1009, %v693
  %v1076 = vsel %vm1038, %v1011, %v695
  %v1078 = vsel %vm1038, %v1013, %v697
  %v1080 = vsel %vm1038, %v1015, %v699
  %v1082 = vsel %vm1038, %v1017, %v701
  %v1084 = vsel %vm1038, %v1019, %v703
  %v1086 = vsel %vm1038, %v1021, %v705
  %v1088 = vsel %vm1038, %v1023, %v707
  %v1090 = vsel %vm1038, %v1025, %v709
  %v1092 = vsel %vm1038, %v1027, %v711
  %v1094 = vsel %vm1038, %v1029, %v713
  %v1096 = vsel %vm1038, %v1031, %v715
  %v1098 = vsel %vm1038, %v1033, %v717
  %v1100 = vsel %vm1038, %v1035, %v719
  %v1102 = vsel %vm1038, %v1037, %v721
  %vm1103 = vcmask 261120
  %v1105 = vsel %vm1103, %v1040, %v729
  %v1107 = vsel %vm1103, %v1042, %v731
  %v1109 = vsel %vm1103, %v1044, %v733
  %v1111 = vsel %vm1103, %v1046, %v735
  %v1113 = vsel %vm1103, %v1048, %v737
  %v1115 = vsel %vm1103, %v1050, %v739
  %v1117 = vsel %vm1103, %v1052, %v741
  %v1119 = vsel %vm1103, %v1054, %v743
  %v1121 = vsel %vm1103, %v1056, %v745
  %v1123 = vsel %vm1103, %v1058, %v747
  %v1125 = vsel %vm1103, %v1060, %v749
  %v1127 = vsel %vm1103, %v1062, %v751
  %v1129 = vsel %vm1103, %v1064, %v753
  %v1131 = vsel %vm1103, %v1066, %v755
  %v1133 = vsel %vm1103, %v1068, %v757
  %v1135 = vsel %vm1103, %v1070, %v759
  %v1137 = vsel %vm1103, %v1072, %v761
  %v1139 = vsel %vm1103, %v1074, %v763
  %v1141 = vsel %vm1103, %v1076, %v765
  %v1143 = vsel %vm1103, %v1078, %v767
  %v1145 = vsel %vm1103, %v1080, %v769
  %v1147 = vsel %vm1103, %v1082, %v771
  %v1149 = vsel %vm1103, %v1084, %v773
  %v1151 = vsel %vm1103, %v1086, %v775
  %v1153 = vsel %vm1103, %v1088, %v777
  %v1155 = vsel %vm1103, %v1090, %v779
  %v1157 = vsel %vm1103, %v1092, %v781
  %v1159 = vsel %vm1103, %v1094, %v783
  %v1161 = vsel %vm1103, %v1096, %v785
  %v1163 = vsel %vm1103, %v1098, %v787
  %v1165 = vsel %vm1103, %v1100, %v789
  %v1167 = vsel %vm1103, %v1102, %v791
  %vm1168 = vcmask 326656
  %v1170 = vsel %vm1168, %v1105, %v813
  %v1172 = vsel %vm1168, %v1107, %v815
  %v1174 = vsel %vm1168, %v1109, %v817
  %v1176 = vsel %vm1168, %v1111, %v819
  %v1178 = vsel %vm1168, %v1113, %v821
  %v1180 = vsel %vm1168, %v1115, %v823
  %v1182 = vsel %vm1168, %v1117, %v825
  %v1184 = vsel %vm1168, %v1119, %v827
  %v1186 = vsel %vm1168, %v1121, %v829
  %v1188 = vsel %vm1168, %v1123, %v831
  %v1190 = vsel %vm1168, %v1125, %v833
  %v1192 = vsel %vm1168, %v1127, %v835
  %v1194 = vsel %vm1168, %v1129, %v837
  %v1196 = vsel %vm1168, %v1131, %v839
  %v1198 = vsel %vm1168, %v1133, %v841
  %v1200 = vsel %vm1168, %v1135, %v843
  %v1202 = vsel %vm1168, %v1137, %v845
  %v1204 = vsel %vm1168, %v1139, %v847
  %v1206 = vsel %vm1168, %v1141, %v849
  %v1208 = vsel %vm1168, %v1143, %v851
  %v1210 = vsel %vm1168, %v1145, %v853
  %v1212 = vsel %vm1168, %v1147, %v855
  %v1214 = vsel %vm1168, %v1149, %v857
  %v1216 = vsel %vm1168, %v1151, %v859
  %v1218 = vsel %vm1168, %v1153, %v861
  %v1220 = vsel %vm1168, %v1155, %v863
  %v1222 = vsel %vm1168, %v1157, %v865
  %v1224 = vsel %vm1168, %v1159, %v867
  %v1226 = vsel %vm1168, %v1161, %v869
  %v1228 = vsel %vm1168, %v1163, %v871
  %v1230 = vsel %vm1168, %v1165, %v873
  %v1232 = vsel %vm1168, %v1167, %v875
  %v1233 = vld [vmem:[%s1] sm:$0xf]
  %v1234 = vld [vmem:[%s1 + $0x4] sm:$0xf]
  %v1235 = vld [vmem:[%s1 + $0x8] sm:$0xf]
  %v1236 = vld [vmem:[%s1 + $0xc] sm:$0xf]
  %v1237 = vld [vmem:[%s1 + $0x10] sm:$0xf]
  %v1238 = vld [vmem:[%s1 + $0x14] sm:$0xf]
  %v1271 = vunpack.c.l.b16 %v1170
  %v1272 = vunpack.c.l.b16 %v1172
  %v1273 = vunpack.c.l.b16 %v1174
  %v1274 = vunpack.c.l.b16 %v1176
  %v1275 = vunpack.c.l.b16 %v1178
  %v1276 = vunpack.c.l.b16 %v1180
  %v1277 = vunpack.c.l.b16 %v1182
  %v1278 = vunpack.c.l.b16 %v1184
  %v1279 = vunpack.c.l.b16 %v1186
  %v1280 = vunpack.c.l.b16 %v1188
  %v1281 = vunpack.c.l.b16 %v1190
  %v1282 = vunpack.c.l.b16 %v1192
  %v1283 = vunpack.c.l.b16 %v1194
  %v1284 = vunpack.c.l.b16 %v1196
  %v1285 = vunpack.c.l.b16 %v1198
  %v1286 = vunpack.c.l.b16 %v1200
  %v1287 = vunpack.c.l.b16 %v1202
  %v1288 = vunpack.c.l.b16 %v1204
  %v1289 = vunpack.c.l.b16 %v1206
  %v1290 = vunpack.c.l.b16 %v1208
  %v1291 = vunpack.c.l.b16 %v1210
  %v1292 = vunpack.c.l.b16 %v1212
  %v1293 = vunpack.c.l.b16 %v1214
  %v1294 = vunpack.c.l.b16 %v1216
  %v1295 = vunpack.c.l.b16 %v1218
  %v1296 = vunpack.c.l.b16 %v1220
  %v1297 = vunpack.c.l.b16 %v1222
  %v1298 = vunpack.c.l.b16 %v1224
  %v1299 = vunpack.c.l.b16 %v1226
  %v1300 = vunpack.c.l.b16 %v1228
  %v1301 = vunpack.c.l.b16 %v1230
  %v1302 = vunpack.c.l.b16 %v1232
  %v1303 = vpack.c.b16 %v1272, %v1271
  %v1304 = vpack.c.b16 %v1274, %v1273
  %v1305 = vpack.c.b16 %v1276, %v1275
  %v1306 = vpack.c.b16 %v1278, %v1277
  %v1307 = vpack.c.b16 %v1280, %v1279
  %v1308 = vpack.c.b16 %v1282, %v1281
  %v1309 = vpack.c.b16 %v1284, %v1283
  %v1310 = vpack.c.b16 %v1286, %v1285
  %v1311 = vpack.c.b16 %v1288, %v1287
  %v1312 = vpack.c.b16 %v1290, %v1289
  %v1313 = vpack.c.b16 %v1292, %v1291
  %v1314 = vpack.c.b16 %v1294, %v1293
  %v1315 = vpack.c.b16 %v1296, %v1295
  %v1316 = vpack.c.b16 %v1298, %v1297
  %v1317 = vpack.c.b16 %v1300, %v1299
  %v1318 = vpack.c.b16 %v1302, %v1301
  %v1325 = vunpack.c.l.b16 %v1233
  %v1326 = vunpack.c.l.b16 %v1234
  %v1327 = vunpack.c.l.b16 %v1235
  %v1328 = vunpack.c.l.b16 %v1236
  %v1329 = vunpack.c.l.b16 %v1237
  %v1330 = vunpack.c.l.b16 %v1238
  %v1331 = vpack.c.b16 %v1326, %v1325
  %v1332 = vpack.c.b16 %v1328, %v1327
  %v1333 = vpack.c.b16 %v1330, %v1329
  %vm1337 = vcmask 392192
  %v1339 = vsel %vm1337, %v1303, 0
  %v1342 = vsel %vm1337, %v1304, 0
  %v1345 = vsel %vm1337, %v1305, 0
  %v1348 = vsel %vm1337, %v1306, 0
  %v1351 = vsel %vm1337, %v1307, 0
  %v1354 = vsel %vm1337, %v1308, 0
  %v1357 = vsel %vm1337, %v1309, 0
  %v1360 = vsel %vm1337, %v1310, 0
  %v1363 = vsel %vm1337, %v1311, 0
  %v1366 = vsel %vm1337, %v1312, 0
  %v1369 = vsel %vm1337, %v1313, 0
  %v1372 = vsel %vm1337, %v1314, 0
  %v1375 = vsel %vm1337, %v1315, 0
  %v1378 = vsel %vm1337, %v1316, 0
  %v1381 = vsel %vm1337, %v1317, 0
  %v1384 = vsel %vm1337, %v1318, 0
  %1386 = vmatprep.subr.bf16.mxu0 0
  %1387 = vmatpush1.bf16.msra.mxu0 %v1331
  %1388 = vmatprep.subr.bf16.mxu0 0
  %1389 = vmatpush1.bf16.msra.mxu0 %v1332
  %1390 = vmatprep.subr.bf16.mxu0 0
  %1391 = vmatpush1.bf16.msra.mxu0 %v1333
  %1392 = vmatprep.subr.bf16.mxu0 0
  %1393 = vmatpush1.bf16.msra.mxu0 0
  %1394 = vmatprep.subr.bf16.mxu0 0
  %1395 = vmatpush1.bf16.msra.mxu0 0
  %1396 = vmatprep.subr.bf16.mxu0 0
  %1397 = vmatpush1.bf16.msra.mxu0 0
  %1398 = vmatprep.subr.bf16.mxu0 0
  %1399 = vmatpush1.bf16.msra.mxu0 0
  %1400 = vmatprep.subr.bf16.mxu0 0
  %1401 = vmatpush1.bf16.msra.mxu0 0
  %1402 = vmatprep.subr.bf16.mxu0 0
  %1403 = vmatpush1.bf16.msra.mxu0 0
  %1404 = vmatprep.subr.bf16.mxu0 0
  %1405 = vmatpush1.bf16.msra.mxu0 0
  %1406 = vmatprep.subr.bf16.mxu0 0
  %1407 = vmatpush1.bf16.msra.mxu0 0
  %1408 = vmatprep.subr.bf16.mxu0 0
  %1409 = vmatpush1.bf16.msra.mxu0 0
  %1410 = vmatprep.subr.bf16.mxu0 0
  %1411 = vmatpush1.bf16.msra.mxu0 0
  %1412 = vmatprep.subr.bf16.mxu0 0
  %1413 = vmatpush1.bf16.msra.mxu0 0
  %1414 = vmatprep.subr.bf16.mxu0 0
  %1415 = vmatpush1.bf16.msra.mxu0 0
  %1416 = vmatprep.subr.bf16.mxu0 0
  %1417 = vmatpush1.bf16.msra.mxu0 0
  %1418 = vmatprep.mubr.bf16.mxu0 0
  %1419 = vmatmul.mubr.bf16.gmra.mrb[0].mxu0 %v1339
  %v1420 = vpop.f32.mrb[0].mxu0
  %v1421 = vadd.f32 0.0, %v1420
  %v1422 = vpop.f32.mrb[0].mxu0
  %v1423 = vpop.f32.mrb[0].mxu0
  %v1424 = vadd.f32 0.0, %v1423
  %v1425 = vpop.f32.mrb[0].mxu0
  %1426 = vmatprep.mubr.bf16.mxu0 0
  %1427 = vmatmul.mubr.bf16.gmra.mrb[0].mxu0 %v1342
  %v1428 = vpop.f32.mrb[0].mxu0
  %v1429 = vadd.f32 0.0, %v1428
  %v1430 = vpop.f32.mrb[0].mxu0
  %v1431 = vpop.f32.mrb[0].mxu0
  %v1432 = vadd.f32 0.0, %v1431
  %v1433 = vpop.f32.mrb[0].mxu0
  %1434 = vmatprep.mubr.bf16.mxu0 0
  %1435 = vmatmul.mubr.bf16.gmra.mrb[0].mxu0 %v1345
  %v1436 = vpop.f32.mrb[0].mxu0
  %v1437 = vadd.f32 0.0, %v1436
  %v1438 = vpop.f32.mrb[0].mxu0
  %v1439 = vpop.f32.mrb[0].mxu0
  %v1440 = vadd.f32 0.0, %v1439
  %v1441 = vpop.f32.mrb[0].mxu0
  %1442 = vmatprep.mubr.bf16.mxu0 0
  %1443 = vmatmul.mubr.bf16.gmra.mrb[0].mxu0 %v1348
  %v1444 = vpop.f32.mrb[0].mxu0
  %v1445 = vadd.f32 0.0, %v1444
  %v1446 = vpop.f32.mrb[0].mxu0
  %v1447 = vpop.f32.mrb[0].mxu0
  %v1448 = vadd.f32 0.0, %v1447
  %v1449 = vpop.f32.mrb[0].mxu0
  %1450 = vmatprep.mubr.bf16.mxu0 0
  %1451 = vmatmul.mubr.bf16.gmra.mrb[0].mxu0 %v1351
  %v1452 = vpop.f32.mrb[0].mxu0
  %v1453 = vadd.f32 0.0, %v1452
  %v1454 = vpop.f32.mrb[0].mxu0
  %v1455 = vpop.f32.mrb[0].mxu0
  %v1456 = vadd.f32 0.0, %v1455
  %v1457 = vpop.f32.mrb[0].mxu0
  %1458 = vmatprep.mubr.bf16.mxu0 0
  %1459 = vmatmul.mubr.bf16.gmra.mrb[0].mxu0 %v1354
  %v1460 = vpop.f32.mrb[0].mxu0
  %v1461 = vadd.f32 0.0, %v1460
  %v1462 = vpop.f32.mrb[0].mxu0
  %v1463 = vpop.f32.mrb[0].mxu0
  %v1464 = vadd.f32 0.0, %v1463
  %v1465 = vpop.f32.mrb[0].mxu0
  %1466 = vmatprep.mubr.bf16.mxu0 0
  %1467 = vmatmul.mubr.bf16.gmra.mrb[0].mxu0 %v1357
  %v1468 = vpop.f32.mrb[0].mxu0
  %v1469 = vadd.f32 0.0, %v1468
  %v1470 = vpop.f32.mrb[0].mxu0
  %v1471 = vpop.f32.mrb[0].mxu0
  %v1472 = vadd.f32 0.0, %v1471
  %v1473 = vpop.f32.mrb[0].mxu0
  %1474 = vmatprep.mubr.bf16.mxu0 0
  %1475 = vmatmul.mubr.bf16.gmra.mrb[0].mxu0 %v1360
  %v1476 = vpop.f32.mrb[0].mxu0
  %v1477 = vadd.f32 0.0, %v1476
  %v1478 = vpop.f32.mrb[0].mxu0
  %v1479 = vpop.f32.mrb[0].mxu0
  %v1480 = vadd.f32 0.0, %v1479
  %v1481 = vpop.f32.mrb[0].mxu0
  %1482 = vmatprep.mubr.bf16.mxu0 0
  %1483 = vmatmul.mubr.bf16.gmra.mrb[0].mxu0 %v1363
  %v1484 = vpop.f32.mrb[0].mxu0
  %v1485 = vadd.f32 0.0, %v1484
  %v1486 = vpop.f32.mrb[0].mxu0
  %v1487 = vpop.f32.mrb[0].mxu0
  %v1488 = vadd.f32 0.0, %v1487
  %v1489 = vpop.f32.mrb[0].mxu0
  %1490 = vmatprep.mubr.bf16.mxu0 0
  %1491 = vmatmul.mubr.bf16.gmra.mrb[0].mxu0 %v1366
  %v1492 = vpop.f32.mrb[0].mxu0
  %v1493 = vadd.f32 0.0, %v1492
  %v1494 = vpop.f32.mrb[0].mxu0
  %v1495 = vpop.f32.mrb[0].mxu0
  %v1496 = vadd.f32 0.0, %v1495
  %v1497 = vpop.f32.mrb[0].mxu0
  %1498 = vmatprep.mubr.bf16.mxu0 0
  %1499 = vmatmul.mubr.bf16.gmra.mrb[0].mxu0 %v1369
  %v1500 = vpop.f32.mrb[0].mxu0
  %v1501 = vadd.f32 0.0, %v1500
  %v1502 = vpop.f32.mrb[0].mxu0
  %v1503 = vpop.f32.mrb[0].mxu0
  %v1504 = vadd.f32 0.0, %v1503
  %v1505 = vpop.f32.mrb[0].mxu0
  %1506 = vmatprep.mubr.bf16.mxu0 0
  %1507 = vmatmul.mubr.bf16.gmra.mrb[0].mxu0 %v1372
  %v1508 = vpop.f32.mrb[0].mxu0
  %v1509 = vadd.f32 0.0, %v1508
  %v1510 = vpop.f32.mrb[0].mxu0
  %v1511 = vpop.f32.mrb[0].mxu0
  %v1512 = vadd.f32 0.0, %v1511
  %v1513 = vpop.f32.mrb[0].mxu0
  %1514 = vmatprep.mubr.bf16.mxu0 0
  %1515 = vmatmul.mubr.bf16.gmra.mrb[0].mxu0 %v1375
  %v1516 = vpop.f32.mrb[0].mxu0
  %v1517 = vadd.f32 0.0, %v1516
  %v1518 = vpop.f32.mrb[0].mxu0
  %v1519 = vpop.f32.mrb[0].mxu0
  %v1520 = vadd.f32 0.0, %v1519
  %v1521 = vpop.f32.mrb[0].mxu0
  %1522 = vmatprep.mubr.bf16.mxu0 0
  %1523 = vmatmul.mubr.bf16.gmra.mrb[0].mxu0 %v1378
  %v1524 = vpop.f32.mrb[0].mxu0
  %v1525 = vadd.f32 0.0, %v1524
  %v1526 = vpop.f32.mrb[0].mxu0
  %v1527 = vpop.f32.mrb[0].mxu0
  %v1528 = vadd.f32 0.0, %v1527
  %v1529 = vpop.f32.mrb[0].mxu0
  %1530 = vmatprep.mubr.bf16.mxu0 0
  %1531 = vmatmul.mubr.bf16.gmra.mrb[0].mxu0 %v1381
  %v1532 = vpop.f32.mrb[0].mxu0
  %v1533 = vadd.f32 0.0, %v1532
  %v1534 = vpop.f32.mrb[0].mxu0
  %v1535 = vpop.f32.mrb[0].mxu0
  %v1536 = vadd.f32 0.0, %v1535
  %v1537 = vpop.f32.mrb[0].mxu0
  %1538 = vmatprep.mubr.bf16.mxu0 0
  %1539 = vmatmul.mubr.bf16.gmra.mrb[0].mxu0 %v1384
  %v1540 = vpop.f32.mrb[0].mxu0
  %v1541 = vadd.f32 0.0, %v1540
  %v1542 = vpop.f32.mrb[0].mxu0
  %v1543 = vpop.f32.mrb[0].mxu0
  %v1544 = vadd.f32 0.0, %v1543
  %v1545 = vpop.f32.mrb[0].mxu0
  %1546 = vdwg.mxu0
  %v1547 = vld [vmem:[%s2] sm:$0x1]
  %v1549 = vlaneseq
  %v1550 = vshrl.u32 %v1549, 7
  %v1551 = vsub.s32 0, %v1550
  %v1552 = vrot.slane %v1547, %v1551
  %v1554 = vmul.f32 %v1421, %v1552
  %v1555 = vmul.f32 %v1424, %v1552
  %v1556 = vmul.f32 %v1429, %v1552
  %v1557 = vmul.f32 %v1432, %v1552
  %v1558 = vmul.f32 %v1437, %v1552
  %v1559 = vmul.f32 %v1440, %v1552
  %v1560 = vmul.f32 %v1445, %v1552
  %v1561 = vmul.f32 %v1448, %v1552
  %v1562 = vmul.f32 %v1453, %v1552
  %v1563 = vmul.f32 %v1456, %v1552
  %v1564 = vmul.f32 %v1461, %v1552
  %v1565 = vmul.f32 %v1464, %v1552
  %v1566 = vmul.f32 %v1469, %v1552
  %v1567 = vmul.f32 %v1472, %v1552
  %v1568 = vmul.f32 %v1477, %v1552
  %v1569 = vmul.f32 %v1480, %v1552
  %v1570 = vmul.f32 %v1485, %v1552
  %v1571 = vmul.f32 %v1488, %v1552
  %v1572 = vmul.f32 %v1493, %v1552
  %v1573 = vmul.f32 %v1496, %v1552
  %v1574 = vmul.f32 %v1501, %v1552
  %v1575 = vmul.f32 %v1504, %v1552
  %v1576 = vmul.f32 %v1509, %v1552
  %v1577 = vmul.f32 %v1512, %v1552
  %v1578 = vmul.f32 %v1517, %v1552
  %v1579 = vmul.f32 %v1520, %v1552
  %v1580 = vmul.f32 %v1525, %v1552
  %v1581 = vmul.f32 %v1528, %v1552
  %v1582 = vmul.f32 %v1533, %v1552
  %v1583 = vmul.f32 %v1536, %v1552
  %v1584 = vmul.f32 %v1541, %v1552
  %v1585 = vmul.f32 %v1544, %v1552
  %v1586 = vld [vmem:[%s3] sm:$0x1]
  %v1588 = vlaneseq
  %v1589 = vshrl.u32 %v1588, 7
  %v1590 = vsub.s32 0, %v1589
  %v1591 = vrot.slane %v1586, %v1590
  %v1593 = vadd.f32 %v1554, %v1591
  %v1594 = vadd.f32 %v1555, %v1591
  %v1595 = vadd.f32 %v1556, %v1591
  %v1596 = vadd.f32 %v1557, %v1591
  %v1597 = vadd.f32 %v1558, %v1591
  %v1598 = vadd.f32 %v1559, %v1591
  %v1599 = vadd.f32 %v1560, %v1591
  %v1600 = vadd.f32 %v1561, %v1591
  %v1601 = vadd.f32 %v1562, %v1591
  %v1602 = vadd.f32 %v1563, %v1591
  %v1603 = vadd.f32 %v1564, %v1591
  %v1604 = vadd.f32 %v1565, %v1591
  %v1605 = vadd.f32 %v1566, %v1591
  %v1606 = vadd.f32 %v1567, %v1591
  %v1607 = vadd.f32 %v1568, %v1591
  %v1608 = vadd.f32 %v1569, %v1591
  %v1609 = vadd.f32 %v1570, %v1591
  %v1610 = vadd.f32 %v1571, %v1591
  %v1611 = vadd.f32 %v1572, %v1591
  %v1612 = vadd.f32 %v1573, %v1591
  %v1613 = vadd.f32 %v1574, %v1591
  %v1614 = vadd.f32 %v1575, %v1591
  %v1615 = vadd.f32 %v1576, %v1591
  %v1616 = vadd.f32 %v1577, %v1591
  %v1617 = vadd.f32 %v1578, %v1591
  %v1618 = vadd.f32 %v1579, %v1591
  %v1619 = vadd.f32 %v1580, %v1591
  %v1620 = vadd.f32 %v1581, %v1591
  %v1621 = vadd.f32 %v1582, %v1591
  %v1622 = vadd.f32 %v1583, %v1591
  %v1623 = vadd.f32 %v1584, %v1591
  %v1624 = vadd.f32 %v1585, %v1591
  %v1625 = vmax.f32 %v1593, 0.0
  %v1626 = vmax.f32 %v1594, 0.0
  %v1627 = vmax.f32 %v1595, 0.0
  %v1628 = vmax.f32 %v1596, 0.0
  %v1629 = vmax.f32 %v1597, 0.0
  %v1630 = vmax.f32 %v1598, 0.0
  %v1631 = vmax.f32 %v1599, 0.0
  %v1632 = vmax.f32 %v1600, 0.0
  %v1633 = vmax.f32 %v1601, 0.0
  %v1634 = vmax.f32 %v1602, 0.0
  %v1635 = vmax.f32 %v1603, 0.0
  %v1636 = vmax.f32 %v1604, 0.0
  %v1637 = vmax.f32 %v1605, 0.0
  %v1638 = vmax.f32 %v1606, 0.0
  %v1639 = vmax.f32 %v1607, 0.0
  %v1640 = vmax.f32 %v1608, 0.0
  %v1641 = vmax.f32 %v1609, 0.0
  %v1642 = vmax.f32 %v1610, 0.0
  %v1643 = vmax.f32 %v1611, 0.0
  %v1644 = vmax.f32 %v1612, 0.0
  %v1645 = vmax.f32 %v1613, 0.0
  %v1646 = vmax.f32 %v1614, 0.0
  %v1647 = vmax.f32 %v1615, 0.0
  %v1648 = vmax.f32 %v1616, 0.0
  %v1649 = vmax.f32 %v1617, 0.0
  %v1650 = vmax.f32 %v1618, 0.0
  %v1651 = vmax.f32 %v1619, 0.0
  %v1652 = vmax.f32 %v1620, 0.0
  %v1653 = vmax.f32 %v1621, 0.0
  %v1654 = vmax.f32 %v1622, 0.0
  %v1655 = vmax.f32 %v1623, 0.0
  %v1656 = vmax.f32 %v1624, 0.0
  %1689 = vrot.lane.b32.xlu0 %v1625, 120
  %v1690 = vpop.permute.xlu0 %1689
  %1691 = vrot.lane.b32.xlu0 %v1626, 120
  %v1692 = vpop.permute.xlu0 %1691
  %1693 = vrot.lane.b32.xlu0 %v1627, 120
  %v1694 = vpop.permute.xlu0 %1693
  %1695 = vrot.lane.b32.xlu0 %v1628, 120
  %v1696 = vpop.permute.xlu0 %1695
  %1697 = vrot.lane.b32.xlu0 %v1629, 120
  %v1698 = vpop.permute.xlu0 %1697
  %1699 = vrot.lane.b32.xlu0 %v1630, 120
  %v1700 = vpop.permute.xlu0 %1699
  %1701 = vrot.lane.b32.xlu0 %v1631, 120
  %v1702 = vpop.permute.xlu0 %1701
  %1703 = vrot.lane.b32.xlu0 %v1632, 120
  %v1704 = vpop.permute.xlu0 %1703
  %1705 = vrot.lane.b32.xlu0 %v1633, 120
  %v1706 = vpop.permute.xlu0 %1705
  %1707 = vrot.lane.b32.xlu0 %v1634, 120
  %v1708 = vpop.permute.xlu0 %1707
  %1709 = vrot.lane.b32.xlu0 %v1635, 120
  %v1710 = vpop.permute.xlu0 %1709
  %1711 = vrot.lane.b32.xlu0 %v1636, 120
  %v1712 = vpop.permute.xlu0 %1711
  %1713 = vrot.lane.b32.xlu0 %v1637, 120
  %v1714 = vpop.permute.xlu0 %1713
  %1715 = vrot.lane.b32.xlu0 %v1638, 120
  %v1716 = vpop.permute.xlu0 %1715
  %1717 = vrot.lane.b32.xlu0 %v1639, 120
  %v1718 = vpop.permute.xlu0 %1717
  %1719 = vrot.lane.b32.xlu0 %v1640, 120
  %v1720 = vpop.permute.xlu0 %1719
  %1721 = vrot.lane.b32.xlu0 %v1641, 120
  %v1722 = vpop.permute.xlu0 %1721
  %1723 = vrot.lane.b32.xlu0 %v1642, 120
  %v1724 = vpop.permute.xlu0 %1723
  %1725 = vrot.lane.b32.xlu0 %v1643, 120
  %v1726 = vpop.permute.xlu0 %1725
  %1727 = vrot.lane.b32.xlu0 %v1644, 120
  %v1728 = vpop.permute.xlu0 %1727
  %1729 = vrot.lane.b32.xlu0 %v1645, 120
  %v1730 = vpop.permute.xlu0 %1729
  %1731 = vrot.lane.b32.xlu0 %v1646, 120
  %v1732 = vpop.permute.xlu0 %1731
  %1733 = vrot.lane.b32.xlu0 %v1647, 120
  %v1734 = vpop.permute.xlu0 %1733
  %1735 = vrot.lane.b32.xlu0 %v1648, 120
  %v1736 = vpop.permute.xlu0 %1735
  %1737 = vrot.lane.b32.xlu0 %v1649, 120
  %v1738 = vpop.permute.xlu0 %1737
  %1739 = vrot.lane.b32.xlu0 %v1650, 120
  %v1740 = vpop.permute.xlu0 %1739
  %1741 = vrot.lane.b32.xlu0 %v1651, 120
  %v1742 = vpop.permute.xlu0 %1741
  %1743 = vrot.lane.b32.xlu0 %v1652, 120
  %v1744 = vpop.permute.xlu0 %1743
  %1745 = vrot.lane.b32.xlu0 %v1653, 120
  %v1746 = vpop.permute.xlu0 %1745
  %1747 = vrot.lane.b32.xlu0 %v1654, 120
  %v1748 = vpop.permute.xlu0 %1747
  %1749 = vrot.lane.b32.xlu0 %v1655, 120
  %v1750 = vpop.permute.xlu0 %1749
  %1751 = vrot.lane.b32.xlu0 %v1656, 120
  %v1752 = vpop.permute.xlu0 %1751
  %v1785 = vmax.f32 %v1625, %v1690
  %v1786 = vmax.f32 %v1626, %v1692
  %v1787 = vmax.f32 %v1627, %v1694
  %v1788 = vmax.f32 %v1628, %v1696
  %v1789 = vmax.f32 %v1629, %v1698
  %v1790 = vmax.f32 %v1630, %v1700
  %v1791 = vmax.f32 %v1631, %v1702
  %v1792 = vmax.f32 %v1632, %v1704
  %v1793 = vmax.f32 %v1633, %v1706
  %v1794 = vmax.f32 %v1634, %v1708
  %v1795 = vmax.f32 %v1635, %v1710
  %v1796 = vmax.f32 %v1636, %v1712
  %v1797 = vmax.f32 %v1637, %v1714
  %v1798 = vmax.f32 %v1638, %v1716
  %v1799 = vmax.f32 %v1639, %v1718
  %v1800 = vmax.f32 %v1640, %v1720
  %v1801 = vmax.f32 %v1641, %v1722
  %v1802 = vmax.f32 %v1642, %v1724
  %v1803 = vmax.f32 %v1643, %v1726
  %v1804 = vmax.f32 %v1644, %v1728
  %v1805 = vmax.f32 %v1645, %v1730
  %v1806 = vmax.f32 %v1646, %v1732
  %v1807 = vmax.f32 %v1647, %v1734
  %v1808 = vmax.f32 %v1648, %v1736
  %v1809 = vmax.f32 %v1649, %v1738
  %v1810 = vmax.f32 %v1650, %v1740
  %v1811 = vmax.f32 %v1651, %v1742
  %v1812 = vmax.f32 %v1652, %v1744
  %v1813 = vmax.f32 %v1653, %v1746
  %v1814 = vmax.f32 %v1654, %v1748
  %v1815 = vmax.f32 %v1655, %v1750
  %v1816 = vmax.f32 %v1656, %v1752
  %v1817 = vmax.f32 %v1785, %v1786
  %v1818 = vmax.f32 %v1787, %v1788
  %v1819 = vmax.f32 %v1789, %v1790
  %v1820 = vmax.f32 %v1791, %v1792
  %v1821 = vmax.f32 %v1793, %v1794
  %v1822 = vmax.f32 %v1795, %v1796
  %v1823 = vmax.f32 %v1797, %v1798
  %v1824 = vmax.f32 %v1799, %v1800
  %v1825 = vmax.f32 %v1801, %v1802
  %v1826 = vmax.f32 %v1803, %v1804
  %v1827 = vmax.f32 %v1805, %v1806
  %v1828 = vmax.f32 %v1807, %v1808
  %v1829 = vmax.f32 %v1809, %v1810
  %v1830 = vmax.f32 %v1811, %v1812
  %v1831 = vmax.f32 %v1813, %v1814
  %v1832 = vmax.f32 %v1815, %v1816
  %v1833 = vpack.c.bf16 %v1817, %v1817
  %v1834 = vpack.c.bf16 %v1818, %v1818
  %v1835 = vpack.c.bf16 %v1819, %v1819
  %v1836 = vpack.c.bf16 %v1820, %v1820
  %v1837 = vpack.c.bf16 %v1821, %v1821
  %v1838 = vpack.c.bf16 %v1822, %v1822
  %v1839 = vpack.c.bf16 %v1823, %v1823
  %v1840 = vpack.c.bf16 %v1824, %v1824
  %v1841 = vpack.c.bf16 %v1825, %v1825
  %v1842 = vpack.c.bf16 %v1826, %v1826
  %v1843 = vpack.c.bf16 %v1827, %v1827
  %v1844 = vpack.c.bf16 %v1828, %v1828
  %v1845 = vpack.c.bf16 %v1829, %v1829
  %v1846 = vpack.c.bf16 %v1830, %v1830
  %v1847 = vpack.c.bf16 %v1831, %v1831
  %v1848 = vpack.c.bf16 %v1832, %v1832
  %vm1849 = vcmask 60416
  %1850 = vst.msk [vmem:[%s4] sm:$0xf] %vm1849, %v1833
  %1851 = vst.msk [vmem:[%s4 + $0x4] sm:$0xf] %vm1849, %v1834
  %1852 = vst.msk [vmem:[%s4 + $0x8] sm:$0xf] %vm1849, %v1835
  %1853 = vst.msk [vmem:[%s4 + $0xc] sm:$0xf] %vm1849, %v1836
  %1854 = vst.msk [vmem:[%s4 + $0x10] sm:$0xf] %vm1849, %v1837
  %1855 = vst.msk [vmem:[%s4 + $0x14] sm:$0xf] %vm1849, %v1838
  %1856 = vst.msk [vmem:[%s4 + $0x18] sm:$0xf] %vm1849, %v1839
  %1857 = vst.msk [vmem:[%s4 + $0x1c] sm:$0xf] %vm1849, %v1840
  %1858 = vst.msk [vmem:[%s4 + $0x20] sm:$0xf] %vm1849, %v1841
  %1859 = vst.msk [vmem:[%s4 + $0x24] sm:$0xf] %vm1849, %v1842
  %1860 = vst.msk [vmem:[%s4 + $0x28] sm:$0xf] %vm1849, %v1843
  %1861 = vst.msk [vmem:[%s4 + $0x2c] sm:$0xf] %vm1849, %v1844
  %1862 = vst.msk [vmem:[%s4 + $0x30] sm:$0xf] %vm1849, %v1845
  %1863 = vst.msk [vmem:[%s4 + $0x34] sm:$0xf] %vm1849, %v1846
  %1864 = vst.msk [vmem:[%s4 + $0x38] sm:$0xf] %vm1849, %v1847
  %1865 = vst.msk [vmem:[%s4 + $0x3c] sm:$0xf] %vm1849, %v1848
  // Predicated region
  $region18: #{encoder_block_forward.3} parent=0 // pred_check
    _
  $region19: #{encoder_block_forward.3} parent=0 // pred_check_branch
    %1867 = sbr.rel (0) target = $region21
  $region20: #{encoder_block_forward.3} parent=0 // pred_region
    _
  $region21: #{encoder_block_forward.3} parent=0 // pred_fallthru
    _
  // Predicated region
  $region22: #{encoder_block_forward.3} parent=0 // pred_check
    _
  $region23: #{encoder_block_forward.3} parent=0 // pred_check_branch
    %1869 = sbr.rel (0) target = $region25
  $region24: #{encoder_block_forward.3} parent=0 // pred_region
    _
  $region25: #{encoder_block_forward.3} parent=0 // pred_fallthru
    _

</llo_original>
